<compile_context>
chip_gen: v5e
topology: v5e:2x2
jax: 0.10.0
libtpu: 0.0.40
codegen_flags: <defaults>
</compile_context>

<pallas_src>
import math
import functools
import numpy as np
import jax
import jax.numpy as jnp
from jax.experimental import pallas as pl
from jax.experimental.pallas import tpu as pltpu


def _layernorm(x, gamma, beta, eps=1e-5):
    mean = jnp.mean(x, axis=-1, keepdims=True)
    var = jnp.mean((x - mean) ** 2, axis=-1, keepdims=True)
    return (x - mean) * jax.lax.rsqrt(var + eps) * gamma + beta


# -------------------------------------------------------------------------------------
# Fused kernel: preprocess (l==0) -> n_layers encoder layers -> cosine Gram (l==L-1)
# -------------------------------------------------------------------------------------
def _fused_kernel(x_hbm, pe_ref,
                  wqkv_ref, bqkv_ref, wo_ref, bo_ref,
                  ln1g_ref, ln1b_ref, w1_ref, b1_ref, w2_ref, b2_ref,
                  ln2g_ref, ln2b_ref,
                  sim_ref,
                  y_sc, mrow_sc, madd_sc, dma_sem, *, n_heads):
    l = pl.program_id(0)
    n_layers = pl.num_programs(0)

    B, K, D = y_sc.shape
    hd = D // n_heads
    scale = 1.0 / math.sqrt(hd)

    # -------- grid step 0: DMA x, InstanceNorm1d, padding fix-up, pos-enc, masks -----
    @pl.when(l == 0)
    def _preprocess():
        cp = pltpu.make_async_copy(x_hbm, y_sc, dma_sem)   # one-shot HBM -> VMEM
        cp.start()
        cp.wait()

        x = y_sc[...]                                      # (B, K, D)
        # InstanceNorm1d over the sequence axis (bn(x.permute(0,2,1)).permute back)
        mean = jnp.mean(x, axis=1, keepdims=True)
        var = jnp.mean((x - mean) ** 2, axis=1, keepdims=True)
        xn = (x - mean) * jax.lax.rsqrt(var + 1e-5)

        # if torch.sum(x == x[0,-1,0]) >= d: x[x == x[0,-1,0]] = 0   (branchless)
        ref_val = xn[0:1, K - 1:K, 0:1]                    # (1, 1, 1)
        eq = xn == ref_val
        cnt = jnp.sum(eq.astype(jnp.float32), axis=(0, 1, 2), keepdims=True)
        xn = jnp.where(jnp.logical_and(eq, cnt >= float(D)), jnp.zeros_like(xn), xn)

        km = jnp.where(xn[:, :, 0:1] == 0.0, 1.0, 0.0)     # (B, K, 1) pad-row mask
        y0 = xn + pe_ref[...]                              # trainable positional enc
        y0 = jnp.where(km > 0.5, 0.0, y0)                  # x[x_mask, :] = 0

        y_sc[...] = y0
        mrow_sc[...] = km
        # additive key-padding score mask, replicated once per head (batch*head rows)
        kmcol = jnp.where(jnp.swapaxes(km, 1, 2) > 0.5, -1e30, 0.0)   # (B, 1, K)
        madd_sc[...] = jnp.broadcast_to(
            kmcol, (B, n_heads, K)).reshape(B * n_heads, 1, K)

    # -------- every grid step: one TransformerEncoderLayer (post-LN, ReLU) -----------
    y3 = y_sc[...]                                         # (B, K, D) resident f32
    y2 = y3.reshape(B * K, D)                              # layout-preserving (K % 8 == 0)
    y2b = y2.astype(jnp.bfloat16)

    # fused Q/K/V projection: one (B*K, D) @ (D, 3D) bf16 MXU matmul, f32 accumulate
    qkv = jnp.dot(y2b, wqkv_ref[...],
                  preferred_element_type=jnp.float32) + bqkv_ref[...]

    def split_heads(x2):                                   # (B*K, D) -> (B*H, K, hd)
        xt = jnp.swapaxes(x2.reshape(B, K, D), 1, 2)                  # (B, D, K)
        return jnp.swapaxes(xt.reshape(B * n_heads, hd, K), 1, 2)     # (B*H, K, hd)

    qh = split_heads(qkv[:, 0:D])
    kh = split_heads(qkv[:, D:2 * D])
    vh = split_heads(qkv[:, 2 * D:3 * D])

    # single head-batched score / softmax / PV (no per-head Python loop, no concat)
    s = jnp.einsum('gqc,gkc->gqk', qh, kh, preferred_element_type=jnp.float32)
    s = s * scale + madd_sc[...]                           # additive key-padding mask
    m = jnp.max(s, axis=-1, keepdims=True)
    e = jnp.exp(s - m)
    p = e * pl.reciprocal(jnp.sum(e, axis=-1, keepdims=True), approx=True)
    ctx = jnp.einsum('gqk,gkc->gqc', p, vh, preferred_element_type=jnp.float32)

    # merge heads back (inverse of split_heads) and one (B*K, D) @ (D, D) out-proj
    ctx2 = jnp.swapaxes(
        jnp.swapaxes(ctx, 1, 2).reshape(B, D, K), 1, 2).reshape(B * K, D)
    attn = jnp.dot(ctx2.astype(jnp.bfloat16), wo_ref[...],
                   preferred_element_type=jnp.float32) + bo_ref[...]

    h1 = _layernorm(y2 + attn, ln1g_ref[...], ln1b_ref[...])          # Add & Norm 1

    ff = jnp.dot(h1.astype(jnp.bfloat16), w1_ref[...],
                 preferred_element_type=jnp.float32) + b1_ref[...]
    ff = jnp.maximum(ff, 0.0)                                          # ReLU
    ff = jnp.dot(ff.astype(jnp.bfloat16), w2_ref[...],
                 preferred_element_type=jnp.float32) + b2_ref[...]

    y_new = _layernorm(h1 + ff, ln2g_ref[...], ln2b_ref[...])          # Add & Norm 2
    y_sc[...] = y_new.reshape(B, K, D)

    # -------- last grid step: final mask, L2-normalize over K, cosine Gram -----------
    @pl.when(l == n_layers - 1)
    def _finalize():
        yz = jnp.where(mrow_sc[...] > 0.5, 0.0, y_new.reshape(B, K, D))
        norm = jnp.sqrt(jnp.sum(yz * yz, axis=1, keepdims=True))       # (B, 1, D)
        yn = yz * pl.reciprocal(jnp.maximum(norm, 1e-12), approx=True)
        gram = jax.lax.dot_general(
            yn, yn, dimension_numbers=(((1,), (1,)), ((0,), (0,))),
            preferred_element_type=jnp.float32)                        # (B, D, D)
        sim_ref[...] = gram.reshape(B, D * D)                          # lane-dense store


def varconet_nocnn_forward(x, params, n_heads):
    B, K, D = x.shape
    L = params['wqkv'].shape[0]
    F = params['w1'].shape[-1]
    pe = params['pe'][:, :K, :]

    # bf16 weight streaming: per-layer weight DMA is the dominant HBM traffic since the
    # activations stay VMEM-resident; biases and LayerNorm params stay f32.
    wqkv = params['wqkv'].astype(jnp.bfloat16)
    wo = params['wo'].astype(jnp.bfloat16)
    w1 = params['w1'].astype(jnp.bfloat16)
    w2 = params['w2'].astype(jnp.bfloat16)

    layer = lambda l: (l, 0, 0)   # streamed per layer
    const = lambda l: (0, 0, 0)   # resident

    in_specs = [
        pl.BlockSpec(memory_space=pl.ANY),           # x stays in HBM; DMA'd once at l==0
        pl.BlockSpec((None, K, D), const),           # pe
        pl.BlockSpec((None, D, 3 * D), layer),       # wqkv (bf16)
        pl.BlockSpec((None, 1, 3 * D), layer),       # bqkv
        pl.BlockSpec((None, D, D), layer),           # wo   (bf16)
        pl.BlockSpec((None, 1, D), layer),           # bo
        pl.BlockSpec((None, 1, D), layer),           # ln1_g
        pl.BlockSpec((None, 1, D), layer),           # ln1_b
        pl.BlockSpec((None, D, F), layer),           # w1   (bf16)
        pl.BlockSpec((None, 1, F), layer),           # b1
        pl.BlockSpec((None, F, D), layer),           # w2   (bf16)
        pl.BlockSpec((None, 1, D), layer),           # b2
        pl.BlockSpec((None, 1, D), layer),           # ln2_g
        pl.BlockSpec((None, 1, D), layer),           # ln2_b
    ]

    sim_flat = pl.pallas_call(
        functools.partial(_fused_kernel, n_heads=n_heads),
        grid=(L,),
        in_specs=in_specs,
        out_specs=pl.BlockSpec((B, D * D), lambda l: (0, 0)),
        out_shape=jax.ShapeDtypeStruct((B, D * D), jnp.float32),
        scratch_shapes=[
            pltpu.VMEM((B, K, D), jnp.float32),              # resident activations
            pltpu.VMEM((B, K, 1), jnp.float32),              # pad-row mask
            pltpu.VMEM((B * n_heads, 1, K), jnp.float32),    # additive key-pad score mask
            pltpu.SemaphoreType.DMA,                         # one-shot x DMA
        ],
        compiler_params=pltpu.CompilerParams(
            dimension_semantics=("arbitrary",),
            # Above the 16/32 MiB scoped defaults, below v7x's 64 MiB physical VMEM.
            # TODO(synk): re-derive for large D/F (tile w1/w2 along F on v7x).
            vmem_limit_bytes=48 * 1024 * 1024,
        ),
    )(x, pe, wqkv, params['bqkv'], wo, params['bo'],
      params['ln1_g'], params['ln1_b'], w1, params['b1'],
      w2, params['b2'], params['ln2_g'], params['ln2_b'])

    # upper-triangular gather (offset=1) — plain-JAX glue on the lane-dense output
    sim = sim_flat.reshape(B, D, D)
    iu, ju = np.triu_indices(D, k=1)
    return sim[:, iu, ju]


# -------------------------------------------------------------------------------------
# Parameter init (per-layer weights stacked along a leading L axis)
# -------------------------------------------------------------------------------------
def init_params(key, d_model, n_layers, n_heads, dim_ff, max_len):
    keys = jax.random.split(key, 1 + n_layers)
    params = {'pe': 0.02 * jax.random.normal(keys[0], (1, max_len, d_model), jnp.float32)}
    s_in = 1.0 / math.sqrt(d_model)
    s_ff = 1.0 / math.sqrt(dim_ff)
    acc = {k: [] for k in ['wqkv', 'bqkv', 'wo', 'bo', 'w1', 'b1', 'w2', 'b2',
                           'ln1_g', 'ln1_b', 'ln2_g', 'ln2_b']}
    for l in range(n_layers):
        ks = jax.random.split(keys[1 + l], 12)
        acc['wqkv'].append(s_in * jax.random.normal(ks[0], (d_model, 3 * d_model), jnp.float32))
        acc['bqkv'].append(0.02 * jax.random.normal(ks[1], (1, 3 * d_model), jnp.float32))
        acc['wo'].append(s_in * jax.random.normal(ks[2], (d_model, d_model), jnp.float32))
        acc['bo'].append(0.02 * jax.random.normal(ks[3], (1, d_model), jnp.float32))
        acc['w1'].append(s_in * jax.random.normal(ks[4], (d_model, dim_ff), jnp.float32))
        acc['b1'].append(0.02 * jax.random.normal(ks[5], (1, dim_ff), jnp.float32))
        acc['w2'].append(s_ff * jax.random.normal(ks[6], (dim_ff, d_model), jnp.float32))
        acc['b2'].append(0.02 * jax.random.normal(ks[7], (1, d_model), jnp.float32))
        acc['ln1_g'].append(1.0 + 0.05 * jax.random.normal(ks[8], (1, d_model), jnp.float32))
        acc['ln1_b'].append(0.05 * jax.random.normal(ks[9], (1, d_model), jnp.float32))
        acc['ln2_g'].append(1.0 + 0.05 * jax.random.normal(ks[10], (1, d_model), jnp.float32))
        acc['ln2_b'].append(0.05 * jax.random.normal(ks[11], (1, d_model), jnp.float32))
    for k, v in acc.items():
        params[k] = jnp.stack(v, axis=0)
    return params


# -------------------------------------------------------------------------------------
# Pure-JAX f32 reference (same math / same parameter layout) for a correctness check
# -------------------------------------------------------------------------------------
def reference_forward(x, params, n_heads):
    B, K, D = x.shape
    hd = D // n_heads
    scale = 1.0 / math.sqrt(hd)

    mean = jnp.mean(x, axis=1, keepdims=True)
    var = jnp.mean((x - mean) ** 2, axis=1, keepdims=True)
    xn = (x - mean) * jax.lax.rsqrt(var + 1e-5)
    eq = xn == xn[0, -1, 0]
    cnt = jnp.sum(eq)
    xn = jnp.where(jnp.logical_and(eq, cnt >= D), 0.0, xn)
    mask = xn[:, :, 0] == 0.0
    y = xn + params['pe'][:, :K, :]
    y = jnp.where(mask[:, :, None], 0.0, y)

    L = params['wqkv'].shape[0]
    for l in range(L):
        qkv = y @ params['wqkv'][l] + params['bqkv'][l]
        q, k_, v = qkv[..., :D], qkv[..., D:2 * D], qkv[..., 2 * D:]
        heads = []
        for h in range(n_heads):
            sl = slice(h * hd, (h + 1) * hd)
            s = jnp.einsum('bqc,bkc->bqk', q[..., sl], k_[..., sl]) * scale
            s = jnp.where(mask[:, None, :], -1e30, s)
            p = jax.nn.softmax(s, axis=-1)
            heads.append(jnp.einsum('bqk,bkc->bqc', p, v[..., sl]))
        attn = jnp.concatenate(heads, axis=-1) @ params['wo'][l] + params['bo'][l]
        h1 = _layernorm(y + attn, params['ln1_g'][l], params['ln1_b'][l])
        ff = jnp.maximum(h1 @ params['w1'][l] + params['b1'][l], 0.0)
        ff = ff @ params['w2'][l] + params['b2'][l]
        y = _layernorm(h1 + ff, params['ln2_g'][l], params['ln2_b'][l])

    y = jnp.where(mask[:, :, None], 0.0, y)
    yt = jnp.swapaxes(y, 1, 2)                              # (B, D, K)
    norm = jnp.sqrt(jnp.sum(yt * yt, axis=-1, keepdims=True))
    ynorm = yt / jnp.maximum(norm, 1e-12)
    sim = jnp.einsum('bik,bjk->bij', ynorm, ynorm)
    iu, ju = np.triu_indices(D, k=1)
    return sim[:, iu, ju]


if __name__ == "__main__":
    B, K = 2, 8
    roi_num = 16
    model_config = {'layers': 2, 'n_heads': 2, 'dim_feedforward': 32, 'max_length': 16}

    key = jax.random.PRNGKey(0)
    kx, kp = jax.random.split(key)
    x = jax.random.normal(kx, (B, K, roi_num), jnp.float32)
    params = init_params(kp, roi_num, model_config['layers'], model_config['n_heads'],
                         model_config['dim_feedforward'], model_config['max_length'])

    out = varconet_nocnn_forward(x, params, model_config['n_heads'])
    out = jax.block_until_ready(out)

    assert out.shape == (B, roi_num * (roi_num - 1) // 2)
    out_np = np.asarray(out)
    assert np.all(np.isfinite(out_np))

    # Tolerance accounts for bf16 MXU operands (streamed bf16 weights) and the
    # approximate EUP reciprocals versus the exact-f32 reference.
    ref = np.asarray(jax.block_until_ready(
        reference_forward(x, params, model_config['n_heads'])))
    np.testing.assert_allclose(out_np, ref, atol=5e-2, rtol=5e-2)

    print("KERNEL_OK")
</pallas_src>

<mosaic_0001>
module attributes {stable_mosaic.version = 11 : i64} {
  func.func @_fused_kernel(%arg0: i32, %arg1: memref<2x8x16xf32, #tpu.memory_space<any>>, %arg2: memref<1x8x16xf32, #tpu.memory_space<vmem>>, %arg3: memref<1x16x48xbf16, #tpu.memory_space<vmem>>, %arg4: memref<1x1x48xf32, #tpu.memory_space<vmem>>, %arg5: memref<1x16x16xbf16, #tpu.memory_space<vmem>>, %arg6: memref<1x1x16xf32, #tpu.memory_space<vmem>>, %arg7: memref<1x1x16xf32, #tpu.memory_space<vmem>>, %arg8: memref<1x1x16xf32, #tpu.memory_space<vmem>>, %arg9: memref<1x16x32xbf16, #tpu.memory_space<vmem>>, %arg10: memref<1x1x32xf32, #tpu.memory_space<vmem>>, %arg11: memref<1x32x16xbf16, #tpu.memory_space<vmem>>, %arg12: memref<1x1x16xf32, #tpu.memory_space<vmem>>, %arg13: memref<1x1x16xf32, #tpu.memory_space<vmem>>, %arg14: memref<1x1x16xf32, #tpu.memory_space<vmem>>, %arg15: memref<2x256xf32, #tpu.memory_space<vmem>>, %arg16: memref<2x8x16xf32, #tpu.memory_space<vmem>>, %arg17: memref<2x8x1xf32, #tpu.memory_space<vmem>>, %arg18: memref<4x1x8xf32, #tpu.memory_space<vmem>>, %arg19: memref<!tpu.dma_semaphore, #tpu.memory_space<semaphore_mem>>) attributes {dimension_semantics = [#tpu.dimension_semantics<arbitrary>], iteration_bounds = array<i64: 2>, scalar_prefetch = 0 : i64, scratch_operands = 4 : i64, tpu.core_type = #tpu.core_type<tc>, window_params = [{}, {pipeline_mode = #tpu.pipeline_mode<synchronous>, transform_indices = @transform_1, window_bounds = array<i64: 1, 8, 16>}, {transform_indices = @transform_2, window_bounds = array<i64: 1, 16, 48>}, {transform_indices = @transform_3, window_bounds = array<i64: 1, 1, 48>}, {transform_indices = @transform_4, window_bounds = array<i64: 1, 16, 16>}, {transform_indices = @transform_5, window_bounds = array<i64: 1, 1, 16>}, {transform_indices = @transform_6, window_bounds = array<i64: 1, 1, 16>}, {transform_indices = @transform_7, window_bounds = array<i64: 1, 1, 16>}, {transform_indices = @transform_8, window_bounds = array<i64: 1, 16, 32>}, {transform_indices = @transform_9, window_bounds = array<i64: 1, 1, 32>}, {transform_indices = @transform_10, window_bounds = array<i64: 1, 32, 16>}, {transform_indices = @transform_11, window_bounds = array<i64: 1, 1, 16>}, {transform_indices = @transform_12, window_bounds = array<i64: 1, 1, 16>}, {transform_indices = @transform_13, window_bounds = array<i64: 1, 1, 16>}, {pipeline_mode = #tpu.pipeline_mode<synchronous>, transform_indices = @transform_14, window_bounds = array<i64: 2, 256>}]} {
    %c0_i32 = arith.constant 0 : i32
    %0 = arith.cmpi eq, %arg0, %c0_i32 : i32
    %1 = arith.extui %0 : i1 to i32
    %c0_i32_0 = arith.constant 0 : i32
    %2 = arith.cmpi ne, %1, %c0_i32_0 : i32
    scf.if %2 {
      tpu.enqueue_dma source(%arg1 : memref<2x8x16xf32, #tpu.memory_space<any>>) target(%arg16 : memref<2x8x16xf32, #tpu.memory_space<vmem>>) target_semaphore(%arg19 : memref<!tpu.dma_semaphore, #tpu.memory_space<semaphore_mem>>)
      tpu.wait_dma2 semaphore(%arg19 : memref<!tpu.dma_semaphore, #tpu.memory_space<semaphore_mem>>) src(%arg1 : memref<2x8x16xf32, #tpu.memory_space<any>>) dst(%arg16 : memref<2x8x16xf32, #tpu.memory_space<vmem>>)
      %c0_65 = arith.constant 0 : index
      %c0_66 = arith.constant 0 : index
      %c0_67 = arith.constant 0 : index
      %134 = vector.load %arg16[%c0_65, %c0_66, %c0_67] : memref<2x8x16xf32, #tpu.memory_space<vmem>>, vector<2x8x16xf32>
      %cst_68 = arith.constant dense<0.000000e+00> : vector<2x16xf32>
      %135 = vector.multi_reduction <add>, %134, %cst_68 [1] : vector<2x8x16xf32> to vector<2x16xf32>
      %136 = vector.shape_cast %135 : vector<2x16xf32> to vector<2x1x16xf32>
      %cst_69 = arith.constant 8.000000e+00 : f32
      %137 = vector.broadcast %cst_69 : f32 to vector<2x1x16xf32>
      %138 = arith.divf %136, %137 : vector<2x1x16xf32>
      %139 = vector.broadcast %138 : vector<2x1x16xf32> to vector<2x8x16xf32>
      %140 = arith.subf %134, %139 : vector<2x8x16xf32>
      %141 = arith.mulf %140, %140 : vector<2x8x16xf32>
      %cst_70 = arith.constant dense<0.000000e+00> : vector<2x16xf32>
      %142 = vector.multi_reduction <add>, %141, %cst_70 [1] : vector<2x8x16xf32> to vector<2x16xf32>
      %143 = vector.shape_cast %142 : vector<2x16xf32> to vector<2x1x16xf32>
      %cst_71 = arith.constant 8.000000e+00 : f32
      %144 = vector.broadcast %cst_71 : f32 to vector<2x1x16xf32>
      %145 = arith.divf %143, %144 : vector<2x1x16xf32>
      %146 = vector.broadcast %138 : vector<2x1x16xf32> to vector<2x8x16xf32>
      %147 = arith.subf %134, %146 : vector<2x8x16xf32>
      %cst_72 = arith.constant 9.99999974E-6 : f32
      %148 = vector.broadcast %cst_72 : f32 to vector<2x1x16xf32>
      %149 = arith.addf %145, %148 : vector<2x1x16xf32>
      %150 = math.rsqrt %149 : vector<2x1x16xf32>
      %151 = vector.broadcast %150 : vector<2x1x16xf32> to vector<2x8x16xf32>
      %152 = arith.mulf %147, %151 : vector<2x8x16xf32>
      %153 = vector.extract_strided_slice %152 {offsets = [0, 7, 0], sizes = [1, 1, 1], strides = [1, 1, 1]} : vector<2x8x16xf32> to vector<1x1x1xf32>
      %154 = vector.broadcast %153 : vector<1x1x1xf32> to vector<2x8x16xf32>
      %155 = arith.cmpf oeq, %152, %154 : vector<2x8x16xf32>
      %156 = arith.extui %155 : vector<2x8x16xi1> to vector<2x8x16xi32>
      %157 = arith.sitofp %156 : vector<2x8x16xi32> to vector<2x8x16xf32>
      %158 = vector.shape_cast %157 : vector<2x8x16xf32> to vector<1x2x8x16xf32>
      %cst_73 = arith.constant dense<0.000000e+00> : vector<1xf32>
      %159 = vector.multi_reduction <add>, %158, %cst_73 [1, 2, 3] : vector<1x2x8x16xf32> to vector<1xf32>
      %160 = vector.shape_cast %159 : vector<1xf32> to vector<1x1x1x1xf32>
      %161 = vector.extract %160[0, 0, 0, 0] : f32 from vector<1x1x1x1xf32>
      %162 = vector.broadcast %161 : f32 to vector<1x1x1xf32>
      %cst_74 = arith.constant 1.600000e+01 : f32
      %163 = vector.broadcast %cst_74 : f32 to vector<1x1x1xf32>
      %164 = arith.cmpf oge, %162, %163 : vector<1x1x1xf32>
      %165 = vector.broadcast %164 : vector<1x1x1xi1> to vector<2x8x16xi1>
      %166 = arith.andi %155, %165 : vector<2x8x16xi1>
      %cst_75 = arith.constant 0.000000e+00 : f32
      %167 = vector.broadcast %cst_75 : f32 to vector<2x8x16xf32>
      %168 = arith.select %166, %167, %152 : vector<2x8x16xi1>, vector<2x8x16xf32>
      %169 = vector.extract_strided_slice %168 {offsets = [0, 0, 0], sizes = [2, 8, 1], strides = [1, 1, 1]} : vector<2x8x16xf32> to vector<2x8x1xf32>
      %cst_76 = arith.constant 0.000000e+00 : f32
      %170 = vector.broadcast %cst_76 : f32 to vector<2x8x1xf32>
      %171 = arith.cmpf oeq, %169, %170 : vector<2x8x1xf32>
      %cst_77 = arith.constant 1.000000e+00 : f32
      %cst_78 = arith.constant 0.000000e+00 : f32
      %172 = vector.broadcast %cst_77 : f32 to vector<2x8x1xf32>
      %173 = vector.broadcast %cst_78 : f32 to vector<2x8x1xf32>
      %174 = arith.select %171, %172, %173 : vector<2x8x1xi1>, vector<2x8x1xf32>
      %c0_79 = arith.constant 0 : index
      %c0_80 = arith.constant 0 : index
      %c0_81 = arith.constant 0 : index
      %175 = vector.load %arg2[%c0_79, %c0_80, %c0_81] : memref<1x8x16xf32, #tpu.memory_space<vmem>>, vector<1x8x16xf32>
      %176 = vector.shape_cast %175 : vector<1x8x16xf32> to vector<8x16xf32>
      %177 = vector.shape_cast %176 : vector<8x16xf32> to vector<1x8x16xf32>
      %178 = vector.broadcast %177 : vector<1x8x16xf32> to vector<2x8x16xf32>
      %179 = arith.addf %168, %178 : vector<2x8x16xf32>
      %cst_82 = arith.constant 5.000000e-01 : f32
      %180 = vector.broadcast %cst_82 : f32 to vector<2x8x1xf32>
      %181 = arith.cmpf ogt, %174, %180 : vector<2x8x1xf32>
      %cst_83 = arith.constant 0.000000e+00 : f32
      %182 = vector.shape_cast %181 : vector<2x8x1xi1> to vector<2x8x1xi1>
      %183 = vector.broadcast %182 : vector<2x8x1xi1> to vector<2x8x16xi1>
      %184 = vector.broadcast %cst_83 : f32 to vector<2x8x16xf32>
      %185 = arith.select %183, %184, %179 : vector<2x8x16xi1>, vector<2x8x16xf32>
      %c0_84 = arith.constant 0 : index
      %c0_85 = arith.constant 0 : index
      %c0_86 = arith.constant 0 : index
      %186 = vector.load %arg16[%c0_84, %c0_85, %c0_86] : memref<2x8x16xf32, #tpu.memory_space<vmem>>, vector<2x8x16xf32>
      tpu.vector_store %arg16[%c0_84, %c0_85, %c0_86], %185 {strides = array<i32>} : memref<2x8x16xf32, #tpu.memory_space<vmem>>, vector<2x8x16xf32>,
      %c0_87 = arith.constant 0 : index
      %c0_88 = arith.constant 0 : index
      %c0_89 = arith.constant 0 : index
      %187 = vector.load %arg17[%c0_87, %c0_88, %c0_89] : memref<2x8x1xf32, #tpu.memory_space<vmem>>, vector<2x8x1xf32>
      tpu.vector_store %arg17[%c0_87, %c0_88, %c0_89], %174 {strides = array<i32>} : memref<2x8x1xf32, #tpu.memory_space<vmem>>, vector<2x8x1xf32>,
      %188 = tpu.transpose %174, [0, 2, 1] : vector<2x8x1xf32> -> vector<2x1x8xf32>
      %cst_90 = arith.constant 5.000000e-01 : f32
      %189 = vector.broadcast %cst_90 : f32 to vector<2x1x8xf32>
      %190 = arith.cmpf ogt, %188, %189 : vector<2x1x8xf32>
      %cst_91 = arith.constant -1.000000e+30 : f32
      %cst_92 = arith.constant 0.000000e+00 : f32
      %191 = vector.broadcast %cst_91 : f32 to vector<2x1x8xf32>
      %192 = vector.broadcast %cst_92 : f32 to vector<2x1x8xf32>
      %193 = arith.select %190, %191, %192 : vector<2x1x8xi1>, vector<2x1x8xf32>
      %194 = vector.shape_cast %193 : vector<2x1x8xf32> to vector<2x1x8xf32>
      %195 = vector.broadcast %194 : vector<2x1x8xf32> to vector<2x2x8xf32>
      %196 = vector.shape_cast %195 : vector<2x2x8xf32> to vector<4x1x8xf32>
      %c0_93 = arith.constant 0 : index
      %c0_94 = arith.constant 0 : index
      %c0_95 = arith.constant 0 : index
      %197 = vector.load %arg18[%c0_93, %c0_94, %c0_95] : memref<4x1x8xf32, #tpu.memory_space<vmem>>, vector<4x1x8xf32>
      tpu.vector_store %arg18[%c0_93, %c0_94, %c0_95], %196 {strides = array<i32>} : memref<4x1x8xf32, #tpu.memory_space<vmem>>, vector<4x1x8xf32>,
    } else {
    }
    %c0 = arith.constant 0 : index
    %c0_1 = arith.constant 0 : index
    %c0_2 = arith.constant 0 : index
    %3 = vector.load %arg16[%c0, %c0_1, %c0_2] : memref<2x8x16xf32, #tpu.memory_space<vmem>>, vector<2x8x16xf32>
    %4 = vector.shape_cast %3 : vector<2x8x16xf32> to vector<16x16xf32>
    %5 = arith.truncf %4 : vector<16x16xf32> to vector<16x16xbf16>
    %c0_3 = arith.constant 0 : index
    %c0_4 = arith.constant 0 : index
    %c0_5 = arith.constant 0 : index
    %6 = vector.load %arg3[%c0_3, %c0_4, %c0_5] : memref<1x16x48xbf16, #tpu.memory_space<vmem>>, vector<1x16x48xbf16>
    %7 = vector.shape_cast %6 : vector<1x16x48xbf16> to vector<16x48xbf16>
    %cst = arith.constant dense<0.000000e+00> : vector<16x48xf32>
    %8 = tpu.matmul %5, %7, %cst {dimension_numbers = #tpu.dot_dimension_numbers<[1], [0], [0], [1], [0, 0, 1, 1], [], []>} : vector<16x16xbf16>, vector<16x48xbf16>, vector<16x48xf32> -> vector<16x48xf32>
    %c0_6 = arith.constant 0 : index
    %c0_7 = arith.constant 0 : index
    %c0_8 = arith.constant 0 : index
    %9 = vector.load %arg4[%c0_6, %c0_7, %c0_8] : memref<1x1x48xf32, #tpu.memory_space<vmem>>, vector<1x1x48xf32>
    %10 = vector.shape_cast %9 : vector<1x1x48xf32> to vector<1x48xf32>
    %11 = vector.broadcast %10 : vector<1x48xf32> to vector<16x48xf32>
    %12 = arith.addf %8, %11 : vector<16x48xf32>
    %13 = vector.extract_strided_slice %12 {offsets = [0, 0], sizes = [16, 16], strides = [1, 1]} : vector<16x48xf32> to vector<16x16xf32>
    %14 = vector.shape_cast %13 : vector<16x16xf32> to vector<2x8x16xf32>
    %15 = tpu.transpose %14, [0, 2, 1] : vector<2x8x16xf32> -> vector<2x16x8xf32>
    %16 = vector.shape_cast %15 : vector<2x16x8xf32> to vector<4x8x8xf32>
    %17 = tpu.transpose %16, [0, 2, 1] : vector<4x8x8xf32> -> vector<4x8x8xf32>
    %18 = vector.extract_strided_slice %12 {offsets = [0, 16], sizes = [16, 16], strides = [1, 1]} : vector<16x48xf32> to vector<16x16xf32>
    %19 = vector.shape_cast %18 : vector<16x16xf32> to vector<2x8x16xf32>
    %20 = tpu.transpose %19, [0, 2, 1] : vector<2x8x16xf32> -> vector<2x16x8xf32>
    %21 = vector.shape_cast %20 : vector<2x16x8xf32> to vector<4x8x8xf32>
    %22 = tpu.transpose %21, [0, 2, 1] : vector<4x8x8xf32> -> vector<4x8x8xf32>
    %23 = vector.extract_strided_slice %12 {offsets = [0, 32], sizes = [16, 16], strides = [1, 1]} : vector<16x48xf32> to vector<16x16xf32>
    %24 = vector.shape_cast %23 : vector<16x16xf32> to vector<2x8x16xf32>
    %25 = tpu.transpose %24, [0, 2, 1] : vector<2x8x16xf32> -> vector<2x16x8xf32>
    %26 = vector.shape_cast %25 : vector<2x16x8xf32> to vector<4x8x8xf32>
    %27 = tpu.transpose %26, [0, 2, 1] : vector<4x8x8xf32> -> vector<4x8x8xf32>
    "tpu.trace_start"() <{level = 10 : i32, message = "gqc,gkc->gqk"}> : () -> ()
    %cst_9 = arith.constant dense<0.000000e+00> : vector<4x8x8xf32>
    %28 = tpu.matmul %17, %22, %cst_9 {dimension_numbers = #tpu.dot_dimension_numbers<[2], [2], [1], [1], [0, 0, 0, 1, 1, 1], [0], [0]>} : vector<4x8x8xf32>, vector<4x8x8xf32>, vector<4x8x8xf32> -> vector<4x8x8xf32>
    "tpu.trace_stop"() : () -> ()
    %cst_10 = arith.constant 0.353553385 : f32
    %29 = vector.broadcast %cst_10 : f32 to vector<4x8x8xf32>
    %30 = arith.mulf %28, %29 : vector<4x8x8xf32>
    %c0_11 = arith.constant 0 : index
    %c0_12 = arith.constant 0 : index
    %c0_13 = arith.constant 0 : index
    %31 = vector.load %arg18[%c0_11, %c0_12, %c0_13] : memref<4x1x8xf32, #tpu.memory_space<vmem>>, vector<4x1x8xf32>
    %32 = vector.broadcast %31 : vector<4x1x8xf32> to vector<4x8x8xf32>
    %33 = arith.addf %30, %32 : vector<4x8x8xf32>
    %cst_14 = arith.constant dense<0xFF800000> : vector<4x8xf32>
    %34 = vector.multi_reduction <maximumf>, %33, %cst_14 [2] : vector<4x8x8xf32> to vector<4x8xf32>
    %35 = vector.shape_cast %34 : vector<4x8xf32> to vector<4x8x1xf32>
    %36 = vector.broadcast %35 : vector<4x8x1xf32> to vector<4x8x8xf32>
    %37 = arith.subf %33, %36 : vector<4x8x8xf32>
    %38 = math.exp %37 : vector<4x8x8xf32>
    %cst_15 = arith.constant dense<0.000000e+00> : vector<4x8xf32>
    %39 = vector.multi_reduction <add>, %38, %cst_15 [2] : vector<4x8x8xf32> to vector<4x8xf32>
    %40 = vector.shape_cast %39 : vector<4x8xf32> to vector<4x8x1xf32>
    %41 = tpu.reciprocal %40 {approx = true} : vector<4x8x1xf32> -> vector<4x8x1xf32>
    %42 = vector.broadcast %41 : vector<4x8x1xf32> to vector<4x8x8xf32>
    %43 = arith.mulf %38, %42 : vector<4x8x8xf32>
    "tpu.trace_start"() <{level = 10 : i32, message = "gqk,gkc->gqc"}> : () -> ()
    %cst_16 = arith.constant dense<0.000000e+00> : vector<4x8x8xf32>
    %44 = tpu.matmul %43, %27, %cst_16 {dimension_numbers = #tpu.dot_dimension_numbers<[2], [1], [1], [2], [0, 0, 0, 1, 1, 2], [0], [0]>} : vector<4x8x8xf32>, vector<4x8x8xf32>, vector<4x8x8xf32> -> vector<4x8x8xf32>
    "tpu.trace_stop"() : () -> ()
    %45 = tpu.transpose %44, [0, 2, 1] : vector<4x8x8xf32> -> vector<4x8x8xf32>
    %46 = vector.shape_cast %45 : vector<4x8x8xf32> to vector<2x16x8xf32>
    %47 = tpu.transpose %46, [0, 2, 1] : vector<2x16x8xf32> -> vector<2x8x16xf32>
    %48 = vector.shape_cast %47 : vector<2x8x16xf32> to vector<16x16xf32>
    %49 = arith.truncf %48 : vector<16x16xf32> to vector<16x16xbf16>
    %c0_17 = arith.constant 0 : index
    %c0_18 = arith.constant 0 : index
    %c0_19 = arith.constant 0 : index
    %50 = vector.load %arg5[%c0_17, %c0_18, %c0_19] : memref<1x16x16xbf16, #tpu.memory_space<vmem>>, vector<1x16x16xbf16>
    %51 = vector.shape_cast %50 : vector<1x16x16xbf16> to vector<16x16xbf16>
    %cst_20 = arith.constant dense<0.000000e+00> : vector<16x16xf32>
    %52 = tpu.matmul %49, %51, %cst_20 {dimension_numbers = #tpu.dot_dimension_numbers<[1], [0], [0], [1], [0, 0, 1, 1], [], []>} : vector<16x16xbf16>, vector<16x16xbf16>, vector<16x16xf32> -> vector<16x16xf32>
    %c0_21 = arith.constant 0 : index
    %c0_22 = arith.constant 0 : index
    %c0_23 = arith.constant 0 : index
    %53 = vector.load %arg6[%c0_21, %c0_22, %c0_23] : memref<1x1x16xf32, #tpu.memory_space<vmem>>, vector<1x1x16xf32>
    %54 = vector.shape_cast %53 : vector<1x1x16xf32> to vector<1x16xf32>
    %55 = vector.broadcast %54 : vector<1x16xf32> to vector<16x16xf32>
    %56 = arith.addf %52, %55 : vector<16x16xf32>
    %57 = arith.addf %4, %56 : vector<16x16xf32>
    %c0_24 = arith.constant 0 : index
    %c0_25 = arith.constant 0 : index
    %c0_26 = arith.constant 0 : index
    %58 = vector.load %arg7[%c0_24, %c0_25, %c0_26] : memref<1x1x16xf32, #tpu.memory_space<vmem>>, vector<1x1x16xf32>
    %59 = vector.shape_cast %58 : vector<1x1x16xf32> to vector<1x16xf32>
    %c0_27 = arith.constant 0 : index
    %c0_28 = arith.constant 0 : index
    %c0_29 = arith.constant 0 : index
    %60 = vector.load %arg8[%c0_27, %c0_28, %c0_29] : memref<1x1x16xf32, #tpu.memory_space<vmem>>, vector<1x1x16xf32>
    %61 = vector.shape_cast %60 : vector<1x1x16xf32> to vector<1x16xf32>
    %cst_30 = arith.constant dense<0.000000e+00> : vector<16xf32>
    %62 = vector.multi_reduction <add>, %57, %cst_30 [1] : vector<16x16xf32> to vector<16xf32>
    %63 = vector.shape_cast %62 : vector<16xf32> to vector<16x1xf32>
    %cst_31 = arith.constant 1.600000e+01 : f32
    %64 = vector.broadcast %cst_31 : f32 to vector<16x1xf32>
    %65 = arith.divf %63, %64 : vector<16x1xf32>
    %66 = vector.broadcast %65 : vector<16x1xf32> to vector<16x16xf32>
    %67 = arith.subf %57, %66 : vector<16x16xf32>
    %68 = arith.mulf %67, %67 : vector<16x16xf32>
    %cst_32 = arith.constant dense<0.000000e+00> : vector<16xf32>
    %69 = vector.multi_reduction <add>, %68, %cst_32 [1] : vector<16x16xf32> to vector<16xf32>
    %70 = vector.shape_cast %69 : vector<16xf32> to vector<16x1xf32>
    %cst_33 = arith.constant 1.600000e+01 : f32
    %71 = vector.broadcast %cst_33 : f32 to vector<16x1xf32>
    %72 = arith.divf %70, %71 : vector<16x1xf32>
    %73 = vector.broadcast %65 : vector<16x1xf32> to vector<16x16xf32>
    %74 = arith.subf %57, %73 : vector<16x16xf32>
    %cst_34 = arith.constant 9.99999974E-6 : f32
    %75 = vector.broadcast %cst_34 : f32 to vector<16x1xf32>
    %76 = arith.addf %72, %75 : vector<16x1xf32>
    %77 = math.rsqrt %76 : vector<16x1xf32>
    %78 = vector.broadcast %77 : vector<16x1xf32> to vector<16x16xf32>
    %79 = arith.mulf %74, %78 : vector<16x16xf32>
    %80 = vector.broadcast %59 : vector<1x16xf32> to vector<16x16xf32>
    %81 = arith.mulf %79, %80 : vector<16x16xf32>
    %82 = vector.broadcast %61 : vector<1x16xf32> to vector<16x16xf32>
    %83 = arith.addf %81, %82 : vector<16x16xf32>
    %84 = arith.truncf %83 : vector<16x16xf32> to vector<16x16xbf16>
    %c0_35 = arith.constant 0 : index
    %c0_36 = arith.constant 0 : index
    %c0_37 = arith.constant 0 : index
    %85 = vector.load %arg9[%c0_35, %c0_36, %c0_37] : memref<1x16x32xbf16, #tpu.memory_space<vmem>>, vector<1x16x32xbf16>
    %86 = vector.shape_cast %85 : vector<1x16x32xbf16> to vector<16x32xbf16>
    %cst_38 = arith.constant dense<0.000000e+00> : vector<16x32xf32>
    %87 = tpu.matmul %84, %86, %cst_38 {dimension_numbers = #tpu.dot_dimension_numbers<[1], [0], [0], [1], [0, 0, 1, 1], [], []>} : vector<16x16xbf16>, vector<16x32xbf16>, vector<16x32xf32> -> vector<16x32xf32>
    %c0_39 = arith.constant 0 : index
    %c0_40 = arith.constant 0 : index
    %c0_41 = arith.constant 0 : index
    %88 = vector.load %arg10[%c0_39, %c0_40, %c0_41] : memref<1x1x32xf32, #tpu.memory_space<vmem>>, vector<1x1x32xf32>
    %89 = vector.shape_cast %88 : vector<1x1x32xf32> to vector<1x32xf32>
    %90 = vector.broadcast %89 : vector<1x32xf32> to vector<16x32xf32>
    %91 = arith.addf %87, %90 : vector<16x32xf32>
    %cst_42 = arith.constant 0.000000e+00 : f32
    %92 = vector.broadcast %cst_42 : f32 to vector<16x32xf32>
    %93 = arith.maximumf %91, %92 : vector<16x32xf32>
    %94 = arith.truncf %93 : vector<16x32xf32> to vector<16x32xbf16>
    %c0_43 = arith.constant 0 : index
    %c0_44 = arith.constant 0 : index
    %c0_45 = arith.constant 0 : index
    %95 = vector.load %arg11[%c0_43, %c0_44, %c0_45] : memref<1x32x16xbf16, #tpu.memory_space<vmem>>, vector<1x32x16xbf16>
    %96 = vector.shape_cast %95 : vector<1x32x16xbf16> to vector<32x16xbf16>
    %cst_46 = arith.constant dense<0.000000e+00> : vector<16x16xf32>
    %97 = tpu.matmul %94, %96, %cst_46 {dimension_numbers = #tpu.dot_dimension_numbers<[1], [0], [0], [1], [0, 0, 1, 1], [], []>} : vector<16x32xbf16>, vector<32x16xbf16>, vector<16x16xf32> -> vector<16x16xf32>
    %c0_47 = arith.constant 0 : index
    %c0_48 = arith.constant 0 : index
    %c0_49 = arith.constant 0 : index
    %98 = vector.load %arg12[%c0_47, %c0_48, %c0_49] : memref<1x1x16xf32, #tpu.memory_space<vmem>>, vector<1x1x16xf32>
    %99 = vector.shape_cast %98 : vector<1x1x16xf32> to vector<1x16xf32>
    %100 = vector.broadcast %99 : vector<1x16xf32> to vector<16x16xf32>
    %101 = arith.addf %97, %100 : vector<16x16xf32>
    %102 = arith.addf %83, %101 : vector<16x16xf32>
    %c0_50 = arith.constant 0 : index
    %c0_51 = arith.constant 0 : index
    %c0_52 = arith.constant 0 : index
    %103 = vector.load %arg13[%c0_50, %c0_51, %c0_52] : memref<1x1x16xf32, #tpu.memory_space<vmem>>, vector<1x1x16xf32>
    %104 = vector.shape_cast %103 : vector<1x1x16xf32> to vector<1x16xf32>
    %c0_53 = arith.constant 0 : index
    %c0_54 = arith.constant 0 : index
    %c0_55 = arith.constant 0 : index
    %105 = vector.load %arg14[%c0_53, %c0_54, %c0_55] : memref<1x1x16xf32, #tpu.memory_space<vmem>>, vector<1x1x16xf32>
    %106 = vector.shape_cast %105 : vector<1x1x16xf32> to vector<1x16xf32>
    %cst_56 = arith.constant dense<0.000000e+00> : vector<16xf32>
    %107 = vector.multi_reduction <add>, %102, %cst_56 [1] : vector<16x16xf32> to vector<16xf32>
    %108 = vector.shape_cast %107 : vector<16xf32> to vector<16x1xf32>
    %cst_57 = arith.constant 1.600000e+01 : f32
    %109 = vector.broadcast %cst_57 : f32 to vector<16x1xf32>
    %110 = arith.divf %108, %109 : vector<16x1xf32>
    %111 = vector.broadcast %110 : vector<16x1xf32> to vector<16x16xf32>
    %112 = arith.subf %102, %111 : vector<16x16xf32>
    %113 = arith.mulf %112, %112 : vector<16x16xf32>
    %cst_58 = arith.constant dense<0.000000e+00> : vector<16xf32>
    %114 = vector.multi_reduction <add>, %113, %cst_58 [1] : vector<16x16xf32> to vector<16xf32>
    %115 = vector.shape_cast %114 : vector<16xf32> to vector<16x1xf32>
    %cst_59 = arith.constant 1.600000e+01 : f32
    %116 = vector.broadcast %cst_59 : f32 to vector<16x1xf32>
    %117 = arith.divf %115, %116 : vector<16x1xf32>
    %118 = vector.broadcast %110 : vector<16x1xf32> to vector<16x16xf32>
    %119 = arith.subf %102, %118 : vector<16x16xf32>
    %cst_60 = arith.constant 9.99999974E-6 : f32
    %120 = vector.broadcast %cst_60 : f32 to vector<16x1xf32>
    %121 = arith.addf %117, %120 : vector<16x1xf32>
    %122 = math.rsqrt %121 : vector<16x1xf32>
    %123 = vector.broadcast %122 : vector<16x1xf32> to vector<16x16xf32>
    %124 = arith.mulf %119, %123 : vector<16x16xf32>
    %125 = vector.broadcast %104 : vector<1x16xf32> to vector<16x16xf32>
    %126 = arith.mulf %124, %125 : vector<16x16xf32>
    %127 = vector.broadcast %106 : vector<1x16xf32> to vector<16x16xf32>
    %128 = arith.addf %126, %127 : vector<16x16xf32>
    %129 = vector.shape_cast %128 : vector<16x16xf32> to vector<2x8x16xf32>
    %c0_61 = arith.constant 0 : index
    %c0_62 = arith.constant 0 : index
    %c0_63 = arith.constant 0 : index
    %130 = vector.load %arg16[%c0_61, %c0_62, %c0_63] : memref<2x8x16xf32, #tpu.memory_space<vmem>>, vector<2x8x16xf32>
    tpu.vector_store %arg16[%c0_61, %c0_62, %c0_63], %129 {strides = array<i32>} : memref<2x8x16xf32, #tpu.memory_space<vmem>>, vector<2x8x16xf32>,
    %c1_i32 = arith.constant 1 : i32
    %131 = arith.cmpi eq, %arg0, %c1_i32 : i32
    %132 = arith.extui %131 : i1 to i32
    %c0_i32_64 = arith.constant 0 : i32
    %133 = arith.cmpi ne, %132, %c0_i32_64 : i32
    scf.if %133 {
      %c0_65 = arith.constant 0 : index
      %c0_66 = arith.constant 0 : index
      %c0_67 = arith.constant 0 : index
      %134 = vector.load %arg17[%c0_65, %c0_66, %c0_67] : memref<2x8x1xf32, #tpu.memory_space<vmem>>, vector<2x8x1xf32>
      %cst_68 = arith.constant 5.000000e-01 : f32
      %135 = vector.broadcast %cst_68 : f32 to vector<2x8x1xf32>
      %136 = arith.cmpf ogt, %134, %135 : vector<2x8x1xf32>
      %137 = vector.shape_cast %128 : vector<16x16xf32> to vector<2x8x16xf32>
      %cst_69 = arith.constant 0.000000e+00 : f32
      %138 = vector.shape_cast %136 : vector<2x8x1xi1> to vector<2x8x1xi1>
      %139 = vector.broadcast %138 : vector<2x8x1xi1> to vector<2x8x16xi1>
      %140 = vector.broadcast %cst_69 : f32 to vector<2x8x16xf32>
      %141 = arith.select %139, %140, %137 : vector<2x8x16xi1>, vector<2x8x16xf32>
      %142 = arith.mulf %141, %141 : vector<2x8x16xf32>
      %cst_70 = arith.constant dense<0.000000e+00> : vector<2x16xf32>
      %143 = vector.multi_reduction <add>, %142, %cst_70 [1] : vector<2x8x16xf32> to vector<2x16xf32>
      %144 = vector.shape_cast %143 : vector<2x16xf32> to vector<2x1x16xf32>
      %145 = math.sqrt %144 : vector<2x1x16xf32>
      %cst_71 = arith.constant 9.99999996E-13 : f32
      %146 = vector.broadcast %cst_71 : f32 to vector<2x1x16xf32>
      %147 = arith.maximumf %145, %146 : vector<2x1x16xf32>
      %148 = tpu.reciprocal %147 {approx = true} : vector<2x1x16xf32> -> vector<2x1x16xf32>
      %149 = vector.broadcast %148 : vector<2x1x16xf32> to vector<2x8x16xf32>
      %150 = arith.mulf %141, %149 : vector<2x8x16xf32>
      %cst_72 = arith.constant dense<0.000000e+00> : vector<2x16x16xf32>
      %151 = tpu.matmul %150, %150, %cst_72 {dimension_numbers = #tpu.dot_dimension_numbers<[1], [1], [2], [2], [0, 0, 0, 2, 1, 2], [0], [0]>} : vector<2x8x16xf32>, vector<2x8x16xf32>, vector<2x16x16xf32> -> vector<2x16x16xf32>
      %152 = vector.shape_cast %151 : vector<2x16x16xf32> to vector<2x256xf32>
      %c0_73 = arith.constant 0 : index
      %c0_74 = arith.constant 0 : index
      %153 = vector.load %arg15[%c0_73, %c0_74] : memref<2x256xf32, #tpu.memory_space<vmem>>, vector<2x256xf32>
      tpu.vector_store %arg15[%c0_73, %c0_74], %152 {strides = array<i32>} : memref<2x256xf32, #tpu.memory_space<vmem>>, vector<2x256xf32>,
    } else {
    }
    return
  }
  func.func @transform_1(%arg0: i32) -> (i32, i32, i32) {
    %c0_i32 = arith.constant 0 : i32
    %c0_i32_0 = arith.constant 0 : i32
    %c0_i32_1 = arith.constant 0 : i32
    %c0_i32_2 = arith.constant 0 : i32
    return %c0_i32, %c0_i32_0, %c0_i32_1 : i32, i32, i32
  }
  func.func @transform_2(%arg0: i32) -> (i32, i32, i32) {
    %c0_i32 = arith.constant 0 : i32
    %c0_i32_0 = arith.constant 0 : i32
    %c0_i32_1 = arith.constant 0 : i32
    return %arg0, %c0_i32, %c0_i32_0 : i32, i32, i32
  }
  func.func @transform_3(%arg0: i32) -> (i32, i32, i32) {
    %c0_i32 = arith.constant 0 : i32
    %c0_i32_0 = arith.constant 0 : i32
    %c0_i32_1 = arith.constant 0 : i32
    return %arg0, %c0_i32, %c0_i32_0 : i32, i32, i32
  }
  func.func @transform_4(%arg0: i32) -> (i32, i32, i32) {
    %c0_i32 = arith.constant 0 : i32
    %c0_i32_0 = arith.constant 0 : i32
    %c0_i32_1 = arith.constant 0 : i32
    return %arg0, %c0_i32, %c0_i32_0 : i32, i32, i32
  }
  func.func @transform_5(%arg0: i32) -> (i32, i32, i32) {
    %c0_i32 = arith.constant 0 : i32
    %c0_i32_0 = arith.constant 0 : i32
    %c0_i32_1 = arith.constant 0 : i32
    return %arg0, %c0_i32, %c0_i32_0 : i32, i32, i32
  }
  func.func @transform_6(%arg0: i32) -> (i32, i32, i32) {
    %c0_i32 = arith.constant 0 : i32
    %c0_i32_0 = arith.constant 0 : i32
    %c0_i32_1 = arith.constant 0 : i32
    return %arg0, %c0_i32, %c0_i32_0 : i32, i32, i32
  }
  func.func @transform_7(%arg0: i32) -> (i32, i32, i32) {
    %c0_i32 = arith.constant 0 : i32
    %c0_i32_0 = arith.constant 0 : i32
    %c0_i32_1 = arith.constant 0 : i32
    return %arg0, %c0_i32, %c0_i32_0 : i32, i32, i32
  }
  func.func @transform_8(%arg0: i32) -> (i32, i32, i32) {
    %c0_i32 = arith.constant 0 : i32
    %c0_i32_0 = arith.constant 0 : i32
    %c0_i32_1 = arith.constant 0 : i32
    return %arg0, %c0_i32, %c0_i32_0 : i32, i32, i32
  }
  func.func @transform_9(%arg0: i32) -> (i32, i32, i32) {
    %c0_i32 = arith.constant 0 : i32
    %c0_i32_0 = arith.constant 0 : i32
    %c0_i32_1 = arith.constant 0 : i32
    return %arg0, %c0_i32, %c0_i32_0 : i32, i32, i32
  }
  func.func @transform_10(%arg0: i32) -> (i32, i32, i32) {
    %c0_i32 = arith.constant 0 : i32
    %c0_i32_0 = arith.constant 0 : i32
    %c0_i32_1 = arith.constant 0 : i32
    return %arg0, %c0_i32, %c0_i32_0 : i32, i32, i32
  }
  func.func @transform_11(%arg0: i32) -> (i32, i32, i32) {
    %c0_i32 = arith.constant 0 : i32
    %c0_i32_0 = arith.constant 0 : i32
    %c0_i32_1 = arith.constant 0 : i32
    return %arg0, %c0_i32, %c0_i32_0 : i32, i32, i32
  }
  func.func @transform_12(%arg0: i32) -> (i32, i32, i32) {
    %c0_i32 = arith.constant 0 : i32
    %c0_i32_0 = arith.constant 0 : i32
    %c0_i32_1 = arith.constant 0 : i32
    return %arg0, %c0_i32, %c0_i32_0 : i32, i32, i32
  }
  func.func @transform_13(%arg0: i32) -> (i32, i32, i32) {
    %c0_i32 = arith.constant 0 : i32
    %c0_i32_0 = arith.constant 0 : i32
    %c0_i32_1 = arith.constant 0 : i32
    return %arg0, %c0_i32, %c0_i32_0 : i32, i32, i32
  }
  func.func @transform_14(%arg0: i32) -> (i32, i32) {
    %c0_i32 = arith.constant 0 : i32
    %c0_i32_0 = arith.constant 0 : i32
    %c0_i32_1 = arith.constant 0 : i32
    return %c0_i32, %c0_i32_0 : i32, i32
  }
}

</mosaic_0001>

<llo_original>
// kernel: tpu_custom_call.1
$region0: #{tpu_custom_call.1}
  #allocation0 [shape = 'u32[]', space=smem, size = 0x4, offset = 0x4, fixed_abs, tag = 'smem constant byte address 0x4 - core index']
  #allocation1 [shape = 'u32[72,128]{1,0:T(1,128)}', space=vmem, size = 0x9000, scoped, tag = 'internal scratch']
  #allocation2 [shape = 'f32[2,8,16]{2,1,0:T(8,128)}', space=vmem, size = 0x2000, scoped, tag = 'scratch operand']
  #allocation3 [shape = 'f32[2,8,1]{2,1,0:T(8,128)}', space=vmem, size = 0x2000, scoped, tag = 'scratch operand']
  #allocation4 [shape = 'f32[4,1,8]{2,1,0:T(1,128)}', space=vmem, size = 0x800, scoped, tag = 'scratch operand']
  #allocation5 [shape = 's32[1]{0}', space=sflag, size = 0x4, scoped, tag = 'scratch operand']
  #allocation15 [shape = 's32[]', space=sflag, size = 0x4, offset = 0, fixed_abs, tag = 'sflag constant byte address 0x0 - dummy sync flag']
  %s0 = inlined_call_operand.vmem [shape: f32[2,8,16], index: 0, kind: input, shape index: {}]
  %s1 = inlined_call_operand.hbm [shape: f32[1,8,16], index: 1, kind: input, shape index: {}]
  %s2 = inlined_call_operand.vmem [shape: bf16[2,16,48], index: 2, kind: input, shape index: {}]
  %s3 = inlined_call_operand.vmem [shape: f32[2,1,48], index: 3, kind: input, shape index: {}]
  %s4 = inlined_call_operand.vmem [shape: bf16[2,16,16], index: 4, kind: input, shape index: {}]
  %s5 = inlined_call_operand.vmem [shape: f32[2,1,16], index: 5, kind: input, shape index: {}]
  %s6 = inlined_call_operand.hbm [shape: f32[2,1,16], index: 6, kind: input, shape index: {}]
  %s7 = inlined_call_operand.vmem [shape: f32[2,1,16], index: 7, kind: input, shape index: {}]
  %s8 = inlined_call_operand.hbm [shape: bf16[2,16,32], index: 8, kind: input, shape index: {}]
  %s9 = inlined_call_operand.vmem [shape: f32[2,1,32], index: 9, kind: input, shape index: {}]
  %s10 = inlined_call_operand.vmem [shape: bf16[2,32,16], index: 10, kind: input, shape index: {}]
  %s11 = inlined_call_operand.vmem [shape: f32[2,1,16], index: 11, kind: input, shape index: {}]
  %s12 = inlined_call_operand.hbm [shape: f32[2,1,16], index: 12, kind: input, shape index: {}]
  %s13 = inlined_call_operand.vmem [shape: f32[2,1,16], index: 13, kind: input, shape index: {}]
  %s14 = inlined_call_operand.hbm [shape: f32[2,256], index: 14, kind: output, shape index: {}]
  %s15 = sld [smem:[#allocation0]]
  $region128: #{tpu_custom_call.1} parent=0
    _
  %s17 = ssub.s32 1, %s15
  %s18 = scalar_select 0, %s17, %s15
  $region1: #{tpu_custom_call.1} parent=0
    #allocation6 [shape = 'u8[4096]{0}', space=vmem, size = 0x1000, scoped, tag = 'input window, operand 1, single buffered']
    #allocation7 [shape = 's32[2]{0}', space=sflag, size = 0x8, scoped, tag = 'scoped memory for tpu_custom_call.1']
    #allocation8 [shape = 's32[2]{0}', space=sflag, size = 0x8, scoped, tag = 'scoped memory for tpu_custom_call.1']
    #allocation9 [shape = 'u8[1024]{0}', space=vmem, size = 0x400, scoped, tag = 'input window, operand 6']
    #allocation10 [shape = 's32[2]{0}', space=sflag, size = 0x8, scoped, tag = 'scoped memory for tpu_custom_call.1']
    #allocation11 [shape = 'u8[8192]{0}', space=vmem, size = 0x2000, scoped, tag = 'input window, operand 8']
    #allocation12 [shape = 'u8[1024]{0}', space=vmem, size = 0x400, scoped, tag = 'input window, operand 12']
    #allocation13 [shape = 's32[2]{0}', space=sflag, size = 0x8, scoped, tag = 'scoped memory for tpu_custom_call.1']
    #allocation14 [shape = 'u8[2048]{0}', space=vmem, size = 0x800, scoped, tag = 'output window, operand 0, single buffered']
    %19 = vsyncpa [#allocation7], 0
    %20 = vsyncpa [#allocation10], 0
    %s21 = scalar_lea.sflag [#allocation10], 1
    %22 = vsyncpa %s21, 0
    %23 = vsyncpa [#allocation13], 0
    %s24 = scalar_lea.sflag [#allocation13], 1
    %25 = vsyncpa %s24, 0
    %26 = vsyncpa [#allocation8], 0
    loop: start=0, step=1, limit=4
    $region2: #{tpu_custom_call.1} parent=1 // loop_pre_header
      _
    $region3: #{tpu_custom_call.1} parent=1 // loop_header
      %s28 = sphi 0, %s32
      %p29 = scmp.ge.s32.totalorder %s28, 4
      %s36 = sphi 0, %s36
      %s38 = sphi 0, %s36
      %s39 = sphi 0, %s38
      %s53 = sphi 0, %s39
      %s59 = sphi 0, %s61
      %s62 = sphi 0, %s59
      %s63 = sphi 0, %s62
      %s79 = sphi 0, %s63
      %s85 = sphi 0, %s87
      %s88 = sphi 0, %s85
      %s89 = sphi 0, %s88
      %s105 = sphi 0, %s89
      %s111 = sphi 0, %s113
      %s114 = sphi 0, %s111
      %s115 = sphi 0, %s114
      %s131 = sphi 0, %s115
      %s137 = sphi 0, %s139
      %s140 = sphi 0, %s137
      %s141 = sphi 0, %s140
      %s157 = sphi 0, %s141
      %s163 = sphi 0, %s165
      %s166 = sphi 0, %s163
      %s167 = sphi 0, %s166
      %s183 = sphi 0, %s167
      %s189 = sphi 0, %s191
      %s192 = sphi 0, %s189
      %s193 = sphi 0, %s192
      %s209 = sphi 0, %s193
      %s215 = sphi 0, %s217
      %s218 = sphi 0, %s215
      %s219 = sphi 0, %s218
      %s235 = sphi 0, %s219
      %s241 = sphi 0, %s243
      %s244 = sphi 0, %s241
      %s245 = sphi 0, %s244
      %s261 = sphi 0, %s245
      %s267 = sphi 0, %s269
      %s270 = sphi 0, %s267
      %s271 = sphi 0, %s270
      %s287 = sphi 0, %s271
      %s293 = sphi 0, %s295
      %s296 = sphi 0, %s293
      %s297 = sphi 0, %s296
      %s313 = sphi 0, %s297
      %s319 = sphi 0, %s321
      %s322 = sphi 0, %s319
      %s323 = sphi 0, %s322
      %s339 = sphi 0, %s323
      %s345 = sphi 0, %s347
      %s348 = sphi 0, %s345
      %s349 = sphi 0, %s348
      %s365 = sphi 0, %s349
      %s369 = sphi 0, %s369
      %s371 = sphi 0, %s369
      %s372 = sphi 0, %s371
      %s386 = sphi 0, %s372
    $region4: #{tpu_custom_call.1} parent=1 // loop_header_branch
      %31 = sbr.rel (%p29) target = $region8
    $region5: #{tpu_custom_call.1} parent=1 // loop_body
      %s33 = ssub.s32 %s28, 1
      %s34 = ssub.s32 %s28, 2
      %s35 = sadd.s32 %s28, 1
      %s37 = sadd.s32 %s36, 1
      %p40 = scmp.eq.s32.totalorder %s28, 1
      %p41 = scmp.ne.s32.totalorder %s36, %s38
      %p42 = scmp.eq.s32.totalorder %s28, 0
      %p43 = por %p41, %p42
      %p44 = scmp.ne.s32.totalorder %s36, %s38
      %p45 = scmp.eq.s32.totalorder %s33, 1
      %p46 = por %p44, %p45
      %p47 = scmp.ne.s32.totalorder %s38, %s39
      %p48 = scmp.eq.s32.totalorder %s33, 0
      %p49 = por %p47, %p48
      %p50 = scmp.ne.s32.totalorder %s38, %s39
      %p51 = scmp.eq.s32.totalorder %s34, 1
      %p52 = por %p50, %p51
      %p54 = scmp.ne.s32.totalorder %s39, %s53
      %p55 = scmp.eq.s32.totalorder %s34, 0
      %p56 = por %p54, %p55
      %s57 = ssub.s32 %s28, %s35
      %p58 = scmp.eq.s32.totalorder %s57, 0
      %s60 = sadd.s32 %s59, 1
      %s61 = scalar_select %p58, %s59, %s60
      %p64 = pneg %p58
      %p65 = scmp.eq.s32.totalorder %s28, 1
      %p66 = por %p64, %p65
      %p67 = scmp.ne.s32.totalorder %s59, %s62
      %p68 = scmp.eq.s32.totalorder %s28, 0
      %p69 = por %p67, %p68
      %p70 = scmp.ne.s32.totalorder %s59, %s62
      %p71 = scmp.eq.s32.totalorder %s33, 1
      %p72 = por %p70, %p71
      %p73 = scmp.ne.s32.totalorder %s62, %s63
      %p74 = scmp.eq.s32.totalorder %s33, 0
      %p75 = por %p73, %p74
      %p76 = scmp.ne.s32.totalorder %s62, %s63
      %p77 = scmp.eq.s32.totalorder %s34, 1
      %p78 = por %p76, %p77
      %p80 = scmp.ne.s32.totalorder %s63, %s79
      %p81 = scmp.eq.s32.totalorder %s34, 0
      %p82 = por %p80, %p81
      %s83 = ssub.s32 %s28, %s35
      %p84 = scmp.eq.s32.totalorder %s83, 0
      %s86 = sadd.s32 %s85, 1
      %s87 = scalar_select %p84, %s85, %s86
      %p90 = pneg %p84
      %p91 = scmp.eq.s32.totalorder %s28, 1
      %p92 = por %p90, %p91
      %p93 = scmp.ne.s32.totalorder %s85, %s88
      %p94 = scmp.eq.s32.totalorder %s28, 0
      %p95 = por %p93, %p94
      %p96 = scmp.ne.s32.totalorder %s85, %s88
      %p97 = scmp.eq.s32.totalorder %s33, 1
      %p98 = por %p96, %p97
      %p99 = scmp.ne.s32.totalorder %s88, %s89
      %p100 = scmp.eq.s32.totalorder %s33, 0
      %p101 = por %p99, %p100
      %p102 = scmp.ne.s32.totalorder %s88, %s89
      %p103 = scmp.eq.s32.totalorder %s34, 1
      %p104 = por %p102, %p103
      %p106 = scmp.ne.s32.totalorder %s89, %s105
      %p107 = scmp.eq.s32.totalorder %s34, 0
      %p108 = por %p106, %p107
      %s109 = ssub.s32 %s28, %s35
      %p110 = scmp.eq.s32.totalorder %s109, 0
      %s112 = sadd.s32 %s111, 1
      %s113 = scalar_select %p110, %s111, %s112
      %p116 = pneg %p110
      %p117 = scmp.eq.s32.totalorder %s28, 1
      %p118 = por %p116, %p117
      %p119 = scmp.ne.s32.totalorder %s111, %s114
      %p120 = scmp.eq.s32.totalorder %s28, 0
      %p121 = por %p119, %p120
      %p122 = scmp.ne.s32.totalorder %s111, %s114
      %p123 = scmp.eq.s32.totalorder %s33, 1
      %p124 = por %p122, %p123
      %p125 = scmp.ne.s32.totalorder %s114, %s115
      %p126 = scmp.eq.s32.totalorder %s33, 0
      %p127 = por %p125, %p126
      %p128 = scmp.ne.s32.totalorder %s114, %s115
      %p129 = scmp.eq.s32.totalorder %s34, 1
      %p130 = por %p128, %p129
      %p132 = scmp.ne.s32.totalorder %s115, %s131
      %p133 = scmp.eq.s32.totalorder %s34, 0
      %p134 = por %p132, %p133
      %s135 = ssub.s32 %s28, %s35
      %p136 = scmp.eq.s32.totalorder %s135, 0
      %s138 = sadd.s32 %s137, 1
      %s139 = scalar_select %p136, %s137, %s138
      %p142 = pneg %p136
      %p143 = scmp.eq.s32.totalorder %s28, 1
      %p144 = por %p142, %p143
      %p145 = scmp.ne.s32.totalorder %s137, %s140
      %p146 = scmp.eq.s32.totalorder %s28, 0
      %p147 = por %p145, %p146
      %p148 = scmp.ne.s32.totalorder %s137, %s140
      %p149 = scmp.eq.s32.totalorder %s33, 1
      %p150 = por %p148, %p149
      %p151 = scmp.ne.s32.totalorder %s140, %s141
      %p152 = scmp.eq.s32.totalorder %s33, 0
      %p153 = por %p151, %p152
      %p154 = scmp.ne.s32.totalorder %s140, %s141
      %p155 = scmp.eq.s32.totalorder %s34, 1
      %p156 = por %p154, %p155
      %p158 = scmp.ne.s32.totalorder %s141, %s157
      %p159 = scmp.eq.s32.totalorder %s34, 0
      %p160 = por %p158, %p159
      %s161 = ssub.s32 %s28, %s35
      %p162 = scmp.eq.s32.totalorder %s161, 0
      %s164 = sadd.s32 %s163, 1
      %s165 = scalar_select %p162, %s163, %s164
      %p168 = pneg %p162
      %p169 = scmp.eq.s32.totalorder %s28, 1
      %p170 = por %p168, %p169
      %p171 = scmp.ne.s32.totalorder %s163, %s166
      %p172 = scmp.eq.s32.totalorder %s28, 0
      %p173 = por %p171, %p172
      %p174 = scmp.ne.s32.totalorder %s163, %s166
      %p175 = scmp.eq.s32.totalorder %s33, 1
      %p176 = por %p174, %p175
      %p177 = scmp.ne.s32.totalorder %s166, %s167
      %p178 = scmp.eq.s32.totalorder %s33, 0
      %p179 = por %p177, %p178
      %p180 = scmp.ne.s32.totalorder %s166, %s167
      %p181 = scmp.eq.s32.totalorder %s34, 1
      %p182 = por %p180, %p181
      %p184 = scmp.ne.s32.totalorder %s167, %s183
      %p185 = scmp.eq.s32.totalorder %s34, 0
      %p186 = por %p184, %p185
      %s187 = ssub.s32 %s28, %s35
      %p188 = scmp.eq.s32.totalorder %s187, 0
      %s190 = sadd.s32 %s189, 1
      %s191 = scalar_select %p188, %s189, %s190
      %p194 = pneg %p188
      %p195 = scmp.eq.s32.totalorder %s28, 1
      %p196 = por %p194, %p195
      %p197 = scmp.ne.s32.totalorder %s189, %s192
      %p198 = scmp.eq.s32.totalorder %s28, 0
      %p199 = por %p197, %p198
      %p200 = scmp.ne.s32.totalorder %s189, %s192
      %p201 = scmp.eq.s32.totalorder %s33, 1
      %p202 = por %p200, %p201
      %p203 = scmp.ne.s32.totalorder %s192, %s193
      %p204 = scmp.eq.s32.totalorder %s33, 0
      %p205 = por %p203, %p204
      %p206 = scmp.ne.s32.totalorder %s192, %s193
      %p207 = scmp.eq.s32.totalorder %s34, 1
      %p208 = por %p206, %p207
      %p210 = scmp.ne.s32.totalorder %s193, %s209
      %p211 = scmp.eq.s32.totalorder %s34, 0
      %p212 = por %p210, %p211
      %s213 = ssub.s32 %s28, %s35
      %p214 = scmp.eq.s32.totalorder %s213, 0
      %s216 = sadd.s32 %s215, 1
      %s217 = scalar_select %p214, %s215, %s216
      %p220 = pneg %p214
      %p221 = scmp.eq.s32.totalorder %s28, 1
      %p222 = por %p220, %p221
      %p223 = scmp.ne.s32.totalorder %s215, %s218
      %p224 = scmp.eq.s32.totalorder %s28, 0
      %p225 = por %p223, %p224
      %p226 = scmp.ne.s32.totalorder %s215, %s218
      %p227 = scmp.eq.s32.totalorder %s33, 1
      %p228 = por %p226, %p227
      %p229 = scmp.ne.s32.totalorder %s218, %s219
      %p230 = scmp.eq.s32.totalorder %s33, 0
      %p231 = por %p229, %p230
      %p232 = scmp.ne.s32.totalorder %s218, %s219
      %p233 = scmp.eq.s32.totalorder %s34, 1
      %p234 = por %p232, %p233
      %p236 = scmp.ne.s32.totalorder %s219, %s235
      %p237 = scmp.eq.s32.totalorder %s34, 0
      %p238 = por %p236, %p237
      %s239 = ssub.s32 %s28, %s35
      %p240 = scmp.eq.s32.totalorder %s239, 0
      %s242 = sadd.s32 %s241, 1
      %s243 = scalar_select %p240, %s241, %s242
      %p246 = pneg %p240
      %p247 = scmp.eq.s32.totalorder %s28, 1
      %p248 = por %p246, %p247
      %p249 = scmp.ne.s32.totalorder %s241, %s244
      %p250 = scmp.eq.s32.totalorder %s28, 0
      %p251 = por %p249, %p250
      %p252 = scmp.ne.s32.totalorder %s241, %s244
      %p253 = scmp.eq.s32.totalorder %s33, 1
      %p254 = por %p252, %p253
      %p255 = scmp.ne.s32.totalorder %s244, %s245
      %p256 = scmp.eq.s32.totalorder %s33, 0
      %p257 = por %p255, %p256
      %p258 = scmp.ne.s32.totalorder %s244, %s245
      %p259 = scmp.eq.s32.totalorder %s34, 1
      %p260 = por %p258, %p259
      %p262 = scmp.ne.s32.totalorder %s245, %s261
      %p263 = scmp.eq.s32.totalorder %s34, 0
      %p264 = por %p262, %p263
      %s265 = ssub.s32 %s28, %s35
      %p266 = scmp.eq.s32.totalorder %s265, 0
      %s268 = sadd.s32 %s267, 1
      %s269 = scalar_select %p266, %s267, %s268
      %p272 = pneg %p266
      %p273 = scmp.eq.s32.totalorder %s28, 1
      %p274 = por %p272, %p273
      %p275 = scmp.ne.s32.totalorder %s267, %s270
      %p276 = scmp.eq.s32.totalorder %s28, 0
      %p277 = por %p275, %p276
      %p278 = scmp.ne.s32.totalorder %s267, %s270
      %p279 = scmp.eq.s32.totalorder %s33, 1
      %p280 = por %p278, %p279
      %p281 = scmp.ne.s32.totalorder %s270, %s271
      %p282 = scmp.eq.s32.totalorder %s33, 0
      %p283 = por %p281, %p282
      %p284 = scmp.ne.s32.totalorder %s270, %s271
      %p285 = scmp.eq.s32.totalorder %s34, 1
      %p286 = por %p284, %p285
      %p288 = scmp.ne.s32.totalorder %s271, %s287
      %p289 = scmp.eq.s32.totalorder %s34, 0
      %p290 = por %p288, %p289
      %s291 = ssub.s32 %s28, %s35
      %p292 = scmp.eq.s32.totalorder %s291, 0
      %s294 = sadd.s32 %s293, 1
      %s295 = scalar_select %p292, %s293, %s294
      %p298 = pneg %p292
      %p299 = scmp.eq.s32.totalorder %s28, 1
      %p300 = por %p298, %p299
      %p301 = scmp.ne.s32.totalorder %s293, %s296
      %p302 = scmp.eq.s32.totalorder %s28, 0
      %p303 = por %p301, %p302
      %p304 = scmp.ne.s32.totalorder %s293, %s296
      %p305 = scmp.eq.s32.totalorder %s33, 1
      %p306 = por %p304, %p305
      %p307 = scmp.ne.s32.totalorder %s296, %s297
      %p308 = scmp.eq.s32.totalorder %s33, 0
      %p309 = por %p307, %p308
      %p310 = scmp.ne.s32.totalorder %s296, %s297
      %p311 = scmp.eq.s32.totalorder %s34, 1
      %p312 = por %p310, %p311
      %p314 = scmp.ne.s32.totalorder %s297, %s313
      %p315 = scmp.eq.s32.totalorder %s34, 0
      %p316 = por %p314, %p315
      %s317 = ssub.s32 %s28, %s35
      %p318 = scmp.eq.s32.totalorder %s317, 0
      %s320 = sadd.s32 %s319, 1
      %s321 = scalar_select %p318, %s319, %s320
      %p324 = pneg %p318
      %p325 = scmp.eq.s32.totalorder %s28, 1
      %p326 = por %p324, %p325
      %p327 = scmp.ne.s32.totalorder %s319, %s322
      %p328 = scmp.eq.s32.totalorder %s28, 0
      %p329 = por %p327, %p328
      %p330 = scmp.ne.s32.totalorder %s319, %s322
      %p331 = scmp.eq.s32.totalorder %s33, 1
      %p332 = por %p330, %p331
      %p333 = scmp.ne.s32.totalorder %s322, %s323
      %p334 = scmp.eq.s32.totalorder %s33, 0
      %p335 = por %p333, %p334
      %p336 = scmp.ne.s32.totalorder %s322, %s323
      %p337 = scmp.eq.s32.totalorder %s34, 1
      %p338 = por %p336, %p337
      %p340 = scmp.ne.s32.totalorder %s323, %s339
      %p341 = scmp.eq.s32.totalorder %s34, 0
      %p342 = por %p340, %p341
      %s343 = ssub.s32 %s28, %s35
      %p344 = scmp.eq.s32.totalorder %s343, 0
      %s346 = sadd.s32 %s345, 1
      %s347 = scalar_select %p344, %s345, %s346
      %p350 = pneg %p344
      %p351 = scmp.eq.s32.totalorder %s28, 1
      %p352 = por %p350, %p351
      %p353 = scmp.ne.s32.totalorder %s345, %s348
      %p354 = scmp.eq.s32.totalorder %s28, 0
      %p355 = por %p353, %p354
      %p356 = scmp.ne.s32.totalorder %s345, %s348
      %p357 = scmp.eq.s32.totalorder %s33, 1
      %p358 = por %p356, %p357
      %p359 = scmp.ne.s32.totalorder %s348, %s349
      %p360 = scmp.eq.s32.totalorder %s33, 0
      %p361 = por %p359, %p360
      %p362 = scmp.ne.s32.totalorder %s348, %s349
      %p363 = scmp.eq.s32.totalorder %s34, 1
      %p364 = por %p362, %p363
      %p366 = scmp.ne.s32.totalorder %s349, %s365
      %p367 = scmp.eq.s32.totalorder %s34, 0
      %p368 = por %p366, %p367
      %s370 = sadd.s32 %s369, 1
      %p373 = scmp.eq.s32.totalorder %s28, 1
      %p374 = scmp.ne.s32.totalorder %s369, %s371
      %p375 = scmp.eq.s32.totalorder %s28, 0
      %p376 = por %p374, %p375
      %p377 = scmp.ne.s32.totalorder %s369, %s371
      %p378 = scmp.eq.s32.totalorder %s33, 1
      %p379 = por %p377, %p378
      %p380 = scmp.ne.s32.totalorder %s371, %s372
      %p381 = scmp.eq.s32.totalorder %s33, 0
      %p382 = por %p380, %p381
      %p383 = scmp.ne.s32.totalorder %s371, %s372
      %p384 = scmp.eq.s32.totalorder %s34, 1
      %p385 = por %p383, %p384
      %p387 = scmp.ne.s32.totalorder %s372, %s386
      %p388 = scmp.eq.s32.totalorder %s34, 0
      %p389 = por %p387, %p388
      %p390 = scmp.le.s32.totalorder 1, %s28
      %p391 = scmp.lt.s32.totalorder %s28, 3
      %p392 = pnand %p390, %p391
      %p393 = pneg %p392
      // Predicated region
      $region9: #{tpu_custom_call.1} parent=5 // pred_check
        _
      $region10: #{tpu_custom_call.1} parent=5 // pred_check_branch
        %395 = sbr.rel (%p392) target = $region12
      $region11: #{tpu_custom_call.1} parent=5 // pred_region
        %s396 = ssub.s32 %s28, 1
        // Predicated region
        $region13: #{tpu_custom_call.1} parent=11 // pred_check
          %p397 = pneg %p49
        $region14: #{tpu_custom_call.1} parent=11 // pred_check_branch
          %399 = sbr.rel (%p397) target = $region16
        $region15: #{tpu_custom_call.1} parent=11 // pred_region
          %401 = vsyncadd [#allocation7], 0
          %s403 = sshll.u32 %s1, 4
          %s404 = int_to_ptr.hbm [resolvable:$true] %s403
          %s405 = sshll.u32 [#allocation6], 4
          %s406 = int_to_ptr.vmem [resolvable:$true] %s405
          %408 = dma.hbm_to_vmem [thread:$0]  %s404, 128, %s406, [#allocation7]
        $region16: #{tpu_custom_call.1} parent=11 // pred_fallthru
          _
      $region12: #{tpu_custom_call.1} parent=5 // pred_fallthru
        _
      %p409 = scmp.lt.s32.totalorder %s28, 2
      // Predicated region
      $region17: #{tpu_custom_call.1} parent=5 // pred_check
        %p410 = pneg %p409
      $region18: #{tpu_custom_call.1} parent=5 // pred_check_branch
        %412 = sbr.rel (%p410) target = $region20
      $region19: #{tpu_custom_call.1} parent=5 // pred_region
        // Predicated region
        $region21: #{tpu_custom_call.1} parent=19 // pred_check
          %p413 = pneg %p69
        $region22: #{tpu_custom_call.1} parent=19 // pred_check_branch
          %415 = sbr.rel (%p413) target = $region24
        $region23: #{tpu_custom_call.1} parent=19 // pred_region
          %p416 = scmp.lt.s32.totalorder %s28, 1
          %s417 = scalar_select %p416, %s28, 1
          %s418 = smul.addr %s417, 2
          %s419 = smul.addr %s418, 4
          %s420 = scalar_lea.vmem %s2, %s419
        $region24: #{tpu_custom_call.1} parent=19 // pred_fallthru
          _
        // Predicated region
        $region25: #{tpu_custom_call.1} parent=19 // pred_check
          %p421 = pneg %p95
        $region26: #{tpu_custom_call.1} parent=19 // pred_check_branch
          %423 = sbr.rel (%p421) target = $region28
        $region27: #{tpu_custom_call.1} parent=19 // pred_region
          %p424 = scmp.lt.s32.totalorder %s28, 1
          %s425 = scalar_select %p424, %s28, 1
          %s426 = scalar_lea.vmem %s3, %s425
        $region28: #{tpu_custom_call.1} parent=19 // pred_fallthru
          _
        // Predicated region
        $region29: #{tpu_custom_call.1} parent=19 // pred_check
          %p427 = pneg %p121
        $region30: #{tpu_custom_call.1} parent=19 // pred_check_branch
          %429 = sbr.rel (%p427) target = $region32
        $region31: #{tpu_custom_call.1} parent=19 // pred_region
          %p430 = scmp.lt.s32.totalorder %s28, 1
          %s431 = scalar_select %p430, %s28, 1
          %s432 = smul.addr %s431, 2
          %s433 = smul.addr %s432, 4
          %s434 = scalar_lea.vmem %s4, %s433
        $region32: #{tpu_custom_call.1} parent=19 // pred_fallthru
          _
        // Predicated region
        $region33: #{tpu_custom_call.1} parent=19 // pred_check
          %p435 = pneg %p147
        $region34: #{tpu_custom_call.1} parent=19 // pred_check_branch
          %437 = sbr.rel (%p435) target = $region36
        $region35: #{tpu_custom_call.1} parent=19 // pred_region
          %p438 = scmp.lt.s32.totalorder %s28, 1
          %s439 = scalar_select %p438, %s28, 1
          %s440 = scalar_lea.vmem %s5, %s439
        $region36: #{tpu_custom_call.1} parent=19 // pred_fallthru
          _
        // Predicated region
        $region37: #{tpu_custom_call.1} parent=19 // pred_check
          %p441 = pneg %p173
        $region38: #{tpu_custom_call.1} parent=19 // pred_check_branch
          %443 = sbr.rel (%p441) target = $region40
        $region39: #{tpu_custom_call.1} parent=19 // pred_region
          %s444 = sand.u32 %s28, 1
          %s445 = scalar_lea.sflag [#allocation10], %s444
          %s446 = sand.u32 %s163, 1
          %s447 = scalar_lea.vmem [#allocation9], %s446
          %449 = vsyncadd %s445, 0
          %s450 = scalar_lea.hbm %s6, %s28
          %s452 = sshll.u32 %s450, 4
          %s453 = int_to_ptr.hbm [resolvable:$true] %s452
          %s454 = sshll.u32 %s447, 4
          %s455 = int_to_ptr.vmem [resolvable:$true] %s454
          %457 = dma.hbm_to_vmem [thread:$0]  %s453, 16, %s455, %s445
        $region40: #{tpu_custom_call.1} parent=19 // pred_fallthru
          _
        // Predicated region
        $region41: #{tpu_custom_call.1} parent=19 // pred_check
          %p458 = pneg %p199
        $region42: #{tpu_custom_call.1} parent=19 // pred_check_branch
          %460 = sbr.rel (%p458) target = $region44
        $region43: #{tpu_custom_call.1} parent=19 // pred_region
          %p461 = scmp.lt.s32.totalorder %s28, 1
          %s462 = scalar_select %p461, %s28, 1
          %s463 = scalar_lea.vmem %s7, %s462
        $region44: #{tpu_custom_call.1} parent=19 // pred_fallthru
          _
        // Predicated region
        $region45: #{tpu_custom_call.1} parent=19 // pred_check
          %p464 = pneg %p225
        $region46: #{tpu_custom_call.1} parent=19 // pred_check_branch
          %466 = sbr.rel (%p464) target = $region48
        $region47: #{tpu_custom_call.1} parent=19 // pred_region
          %s467 = sand.u32 %s28, 1
          %s468 = scalar_lea.sflag [#allocation10], %s467
          %s469 = sand.u32 %s215, 1
          %s470 = smul.addr %s469, 8
          %s471 = scalar_lea.vmem [#allocation11], %s470
          %473 = vsyncadd %s468, 0
          %s474 = smul.addr %s28, 2
          %s475 = smul.addr %s474, 4
          %s476 = scalar_lea.hbm %s8, %s475
          %s477 = sshll.u32 %s476, 4
          %s478 = int_to_ptr.hbm [resolvable:$true] %s477
          %s479 = sshll.u32 %s471, 4
          %s480 = int_to_ptr.vmem [resolvable:$true] %s479
          %485 = dma.hbm_to_vmem [thread:$0]  %s478, 128, %s480, %s468, 64, 64, 4
        $region48: #{tpu_custom_call.1} parent=19 // pred_fallthru
          _
        // Predicated region
        $region49: #{tpu_custom_call.1} parent=19 // pred_check
          %p486 = pneg %p251
        $region50: #{tpu_custom_call.1} parent=19 // pred_check_branch
          %488 = sbr.rel (%p486) target = $region52
        $region51: #{tpu_custom_call.1} parent=19 // pred_region
          %p489 = scmp.lt.s32.totalorder %s28, 1
          %s490 = scalar_select %p489, %s28, 1
          %s491 = scalar_lea.vmem %s9, %s490
        $region52: #{tpu_custom_call.1} parent=19 // pred_fallthru
          _
        // Predicated region
        $region53: #{tpu_custom_call.1} parent=19 // pred_check
          %p492 = pneg %p277
        $region54: #{tpu_custom_call.1} parent=19 // pred_check_branch
          %494 = sbr.rel (%p492) target = $region56
        $region55: #{tpu_custom_call.1} parent=19 // pred_region
          %p495 = scmp.lt.s32.totalorder %s28, 1
          %s496 = scalar_select %p495, %s28, 1
          %s497 = smul.addr %s496, 4
          %s498 = smul.addr %s497, 4
          %s499 = scalar_lea.vmem %s10, %s498
        $region56: #{tpu_custom_call.1} parent=19 // pred_fallthru
          _
        // Predicated region
        $region57: #{tpu_custom_call.1} parent=19 // pred_check
          %p500 = pneg %p303
        $region58: #{tpu_custom_call.1} parent=19 // pred_check_branch
          %502 = sbr.rel (%p500) target = $region60
        $region59: #{tpu_custom_call.1} parent=19 // pred_region
          %p503 = scmp.lt.s32.totalorder %s28, 1
          %s504 = scalar_select %p503, %s28, 1
          %s505 = scalar_lea.vmem %s11, %s504
        $region60: #{tpu_custom_call.1} parent=19 // pred_fallthru
          _
        // Predicated region
        $region61: #{tpu_custom_call.1} parent=19 // pred_check
          %p506 = pneg %p329
        $region62: #{tpu_custom_call.1} parent=19 // pred_check_branch
          %508 = sbr.rel (%p506) target = $region64
        $region63: #{tpu_custom_call.1} parent=19 // pred_region
          %s509 = sand.u32 %s319, 1
          %s510 = scalar_lea.sflag [#allocation13], %s509
          %s511 = sand.u32 %s319, 1
          %s512 = scalar_lea.vmem [#allocation12], %s511
          %514 = vsyncadd %s510, 0
          %s515 = scalar_lea.hbm %s12, %s28
          %s517 = sshll.u32 %s515, 4
          %s518 = int_to_ptr.hbm [resolvable:$true] %s517
          %s519 = sshll.u32 %s512, 4
          %s520 = int_to_ptr.vmem [resolvable:$true] %s519
          %522 = dma.hbm_to_vmem [thread:$0]  %s518, 16, %s520, %s510
        $region64: #{tpu_custom_call.1} parent=19 // pred_fallthru
          _
        // Predicated region
        $region65: #{tpu_custom_call.1} parent=19 // pred_check
          %p523 = pneg %p355
        $region66: #{tpu_custom_call.1} parent=19 // pred_check_branch
          %525 = sbr.rel (%p523) target = $region68
        $region67: #{tpu_custom_call.1} parent=19 // pred_region
          %p526 = scmp.lt.s32.totalorder %s28, 1
          %s527 = scalar_select %p526, %s28, 1
          %s528 = scalar_lea.vmem %s13, %s527
        $region68: #{tpu_custom_call.1} parent=19 // pred_fallthru
          _
      $region20: #{tpu_custom_call.1} parent=5 // pred_fallthru
        _
      %p529 = scmp.le.s32.totalorder 1, %s28
      %p530 = scmp.lt.s32.totalorder %s28, 3
      %p531 = pnand %p529, %p530
      %p532 = pneg %p531
      // Predicated region
      $region69: #{tpu_custom_call.1} parent=5 // pred_check
        _
      $region70: #{tpu_custom_call.1} parent=5 // pred_check_branch
        %534 = sbr.rel (%p531) target = $region72
      $region71: #{tpu_custom_call.1} parent=5 // pred_region
        %s535 = ssub.s32 %s28, 1
        // Predicated region
        $region73: #{tpu_custom_call.1} parent=71 // pred_check
          %p536 = pneg %p49
        $region74: #{tpu_custom_call.1} parent=71 // pred_check_branch
          %538 = sbr.rel (%p536) target = $region76
        $region75: #{tpu_custom_call.1} parent=71 // pred_region
          %540 = dma.done [#allocation7], 128
        $region76: #{tpu_custom_call.1} parent=71 // pred_fallthru
          _
        %s541 = sand.u32 %s33, 1
        %s542 = scalar_lea.sflag [#allocation10], %s541
        %s543 = sand.u32 %s166, 1
        %s544 = scalar_lea.vmem [#allocation9], %s543
        // Predicated region
        $region77: #{tpu_custom_call.1} parent=71 // pred_check
          %p545 = pneg %p179
        $region78: #{tpu_custom_call.1} parent=71 // pred_check_branch
          %547 = sbr.rel (%p545) target = $region80
        $region79: #{tpu_custom_call.1} parent=71 // pred_region
          %549 = dma.done %s542, 16
        $region80: #{tpu_custom_call.1} parent=71 // pred_fallthru
          _
        %s550 = sand.u32 %s33, 1
        %s551 = scalar_lea.sflag [#allocation10], %s550
        %s552 = sand.u32 %s218, 1
        %s553 = smul.addr %s552, 8
        %s554 = scalar_lea.vmem [#allocation11], %s553
        // Predicated region
        $region81: #{tpu_custom_call.1} parent=71 // pred_check
          %p555 = pneg %p231
        $region82: #{tpu_custom_call.1} parent=71 // pred_check_branch
          %557 = sbr.rel (%p555) target = $region84
        $region83: #{tpu_custom_call.1} parent=71 // pred_region
          %559 = dma.done %s551, 128
        $region84: #{tpu_custom_call.1} parent=71 // pred_fallthru
          _
        %s560 = sand.u32 %s322, 1
        %s561 = scalar_lea.sflag [#allocation13], %s560
        %s562 = sand.u32 %s322, 1
        %s563 = scalar_lea.vmem [#allocation12], %s562
        // Predicated region
        $region85: #{tpu_custom_call.1} parent=71 // pred_check
          %p564 = pneg %p335
        $region86: #{tpu_custom_call.1} parent=71 // pred_check_branch
          %566 = sbr.rel (%p564) target = $region88
        $region87: #{tpu_custom_call.1} parent=71 // pred_region
          %568 = dma.done %s561, 16
        $region88: #{tpu_custom_call.1} parent=71 // pred_fallthru
          _
        %p569 = pneg %p49
        %p570 = pneg %p46
        %p571 = scmp.lt.s32.totalorder %s33, 1
        %s572 = scalar_select %p571, %s33, 1
        %s573 = smul.addr %s572, 2
        %s574 = smul.addr %s573, 4
        %s575 = scalar_lea.vmem %s2, %s574
        %p576 = pneg %p75
        %p577 = pneg %p72
        %p578 = scmp.lt.s32.totalorder %s33, 1
        %s579 = scalar_select %p578, %s33, 1
        %s580 = scalar_lea.vmem %s3, %s579
        %p581 = pneg %p101
        %p582 = pneg %p98
        %p583 = scmp.lt.s32.totalorder %s33, 1
        %s584 = scalar_select %p583, %s33, 1
        %s585 = smul.addr %s584, 2
        %s586 = smul.addr %s585, 4
        %s587 = scalar_lea.vmem %s4, %s586
        %p588 = pneg %p127
        %p589 = pneg %p124
        %p590 = scmp.lt.s32.totalorder %s33, 1
        %s591 = scalar_select %p590, %s33, 1
        %s592 = scalar_lea.vmem %s5, %s591
        %p593 = pneg %p153
        %p594 = pneg %p150
        %s595 = sand.u32 %s33, 1
        %s596 = scalar_lea.sflag [#allocation10], %s595
        %s597 = sand.u32 %s166, 1
        %s598 = scalar_lea.vmem [#allocation9], %s597
        %p599 = pneg %p179
        %p600 = pneg %p176
        %p601 = scmp.lt.s32.totalorder %s33, 1
        %s602 = scalar_select %p601, %s33, 1
        %s603 = scalar_lea.vmem %s7, %s602
        %p604 = pneg %p205
        %p605 = pneg %p202
        %s606 = sand.u32 %s33, 1
        %s607 = scalar_lea.sflag [#allocation10], %s606
        %s608 = sand.u32 %s218, 1
        %s609 = smul.addr %s608, 8
        %s610 = scalar_lea.vmem [#allocation11], %s609
        %p611 = pneg %p231
        %p612 = pneg %p228
        %p613 = scmp.lt.s32.totalorder %s33, 1
        %s614 = scalar_select %p613, %s33, 1
        %s615 = scalar_lea.vmem %s9, %s614
        %p616 = pneg %p257
        %p617 = pneg %p254
        %p618 = scmp.lt.s32.totalorder %s33, 1
        %s619 = scalar_select %p618, %s33, 1
        %s620 = smul.addr %s619, 4
        %s621 = smul.addr %s620, 4
        %s622 = scalar_lea.vmem %s10, %s621
        %p623 = pneg %p283
        %p624 = pneg %p280
        %p625 = scmp.lt.s32.totalorder %s33, 1
        %s626 = scalar_select %p625, %s33, 1
        %s627 = scalar_lea.vmem %s11, %s626
        %p628 = pneg %p309
        %p629 = pneg %p306
        %s630 = sand.u32 %s322, 1
        %s631 = scalar_lea.sflag [#allocation13], %s630
        %s632 = sand.u32 %s322, 1
        %s633 = scalar_lea.vmem [#allocation12], %s632
        %p634 = pneg %p335
        %p635 = pneg %p332
        %p636 = scmp.lt.s32.totalorder %s33, 1
        %s637 = scalar_select %p636, %s33, 1
        %s638 = scalar_lea.vmem %s13, %s637
        %p639 = pneg %p361
        %p640 = pneg %p358
        %p641 = pneg %p382
        %p642 = pneg %p379
        %p643 = scmp.lt.s32.totalorder %s33, 1
        %s644 = scalar_select %p643, %s33, 1
        %s645 = smul.addr %s644, 2
        %s646 = smul.addr %s645, 4
        %s647 = scalar_lea.vmem %s2, %s646
        %p648 = scmp.lt.s32.totalorder %s33, 1
        %s649 = scalar_select %p648, %s33, 1
        %s650 = scalar_lea.vmem %s3, %s649
        %p651 = scmp.lt.s32.totalorder %s33, 1
        %s652 = scalar_select %p651, %s33, 1
        %s653 = smul.addr %s652, 2
        %s654 = smul.addr %s653, 4
        %s655 = scalar_lea.vmem %s4, %s654
        %p656 = scmp.lt.s32.totalorder %s33, 1
        %s657 = scalar_select %p656, %s33, 1
        %s658 = scalar_lea.vmem %s5, %s657
        %p659 = scmp.lt.s32.totalorder %s33, 1
        %s660 = scalar_select %p659, %s33, 1
        %s661 = scalar_lea.vmem %s7, %s660
        %p662 = scmp.lt.s32.totalorder %s33, 1
        %s663 = scalar_select %p662, %s33, 1
        %s664 = scalar_lea.vmem %s9, %s663
        %p665 = scmp.lt.s32.totalorder %s33, 1
        %s666 = scalar_select %p665, %s33, 1
        %s667 = smul.addr %s666, 4
        %s668 = smul.addr %s667, 4
        %s669 = scalar_lea.vmem %s10, %s668
        %p670 = scmp.lt.s32.totalorder %s33, 1
        %s671 = scalar_select %p670, %s33, 1
        %s672 = scalar_lea.vmem %s11, %s671
        %p673 = scmp.lt.s32.totalorder %s33, 1
        %s674 = scalar_select %p673, %s33, 1
        %s675 = scalar_lea.vmem %s13, %s674
        %p677 = scmp.eq.s32.totalorder %s33, 0
        // Predicated region
        $region89: #{tpu_custom_call.1} parent=71 // pred_check
          %p678 = pneg %p677
        $region90: #{tpu_custom_call.1} parent=71 // pred_check_branch
          %680 = sbr.rel (%p678) target = $region92
        $region91: #{tpu_custom_call.1} parent=71 // pred_region
          // Predicated region
          $region93: #{tpu_custom_call.1} parent=91 // pred_check
            _
          $region94: #{tpu_custom_call.1} parent=91 // pred_check_branch
            %682 = sbr.rel (0) target = $region96
          $region95: #{tpu_custom_call.1} parent=91 // pred_region
            loop: start=0, step=1, limit=1
            $region97: #{tpu_custom_call.1} parent=95 // loop_pre_header
              _
            $region98: #{tpu_custom_call.1} parent=95 // loop_header
              %s684 = sphi 0, %s688
              %p685 = scmp.ge.s32.totalorder %s684, 1
              %s689 = sphi %s0, %s0
              %s690 = sphi [#allocation2], [#allocation2]
            $region99: #{tpu_custom_call.1} parent=95 // loop_header_branch
              %687 = sbr.rel (%p685) target = $region103
            $region100: #{tpu_custom_call.1} parent=95 // loop_body
              %v691 = vld [vmem:[%s689] sm:$0xff]
              %692 = vst [vmem:[%s690] sm:$0xff] %v691
              %v693 = vld [vmem:[%s689 + $0x8] sm:$0xff]
              %694 = vst [vmem:[%s690 + $0x8] sm:$0xff] %v693
            $region101: #{tpu_custom_call.1} parent=95 // loop_footer
              %s688 = sadd.s32 1, %s684
            $region102: #{tpu_custom_call.1} parent=95 // loop_footer_branch
              %683 = sbr.rel target = $region98
            $region103: #{tpu_custom_call.1} parent=95 // loop_exit
              _
          $region96: #{tpu_custom_call.1} parent=91 // pred_fallthru
            _
          // Predicated region
          $region104: #{tpu_custom_call.1} parent=91 // pred_check
            _
          $region105: #{tpu_custom_call.1} parent=91 // pred_check_branch
            %696 = sbr.rel target = $region107
          $region106: #{tpu_custom_call.1} parent=91 // pred_region
            _
          $region107: #{tpu_custom_call.1} parent=91 // pred_fallthru
            _
          // Predicated region
          $region108: #{tpu_custom_call.1} parent=91 // pred_check
            _
          $region109: #{tpu_custom_call.1} parent=91 // pred_check_branch
            %699 = sbr.rel (0) target = $region111
          $region110: #{tpu_custom_call.1} parent=91 // pred_region
            %700 = vsyncadd [#allocation5], 256
          $region111: #{tpu_custom_call.1} parent=91 // pred_fallthru
            _
          %s701 = smul.u32 2, 8
          %s702 = smul.u32 %s701, 1
          %s703 = sshll.u32 %s702, 4
          %704 = dma.done [#allocation5], %s703
          %v705 = vld [vmem:[#allocation2] sm:$0xff]
          %v706 = vld [vmem:[#allocation2 + $0x8] sm:$0xff]
          %vm707 = vcmask 130048
          %v708 = vsel %vm707, %v705, 0.0
          %v709 = vrot.slane %v708, 4
          %v710 = vadd.f32 %v708, %v709
          %v711 = vrot.slane %v710, 2
          %v712 = vadd.f32 %v710, %v711
          %v713 = vrot.slane %v712, 1
          %v714 = vadd.f32 %v712, %v713
          %v715 = vsel %vm707, %v706, 0.0
          %v716 = vrot.slane %v715, 4
          %v717 = vadd.f32 %v715, %v716
          %v718 = vrot.slane %v717, 2
          %v719 = vadd.f32 %v717, %v718
          %v720 = vrot.slane %v719, 1
          %v721 = vadd.f32 %v719, %v720
          %v722 = vrcp.pop 8.0
          %v723 = vmul.f32 8.0, %v722
          %v724 = vsub.f32 1.0, %v723
          %v725 = vmul.f32 %v722, %v724
          %v726 = vadd.f32 %v722, %v725
          %vm727 = vweird.f32 %v722
          %v728 = vsel %vm727, %v722, %v726
          %v729 = vmul.f32 %v714, %v728
          %v730 = vmul.f32 %v721, %v728
          %v731 = vsub.f32 %v705, %v729
          %v732 = vsub.f32 %v706, %v730
          %v733 = vmul.f32 %v731, %v731
          %v734 = vmul.f32 %v732, %v732
          %v735 = vsel %vm707, %v733, 0.0
          %v736 = vrot.slane %v735, 4
          %v737 = vadd.f32 %v735, %v736
          %v738 = vrot.slane %v737, 2
          %v739 = vadd.f32 %v737, %v738
          %v740 = vrot.slane %v739, 1
          %v741 = vadd.f32 %v739, %v740
          %v742 = vsel %vm707, %v734, 0.0
          %v743 = vrot.slane %v742, 4
          %v744 = vadd.f32 %v742, %v743
          %v745 = vrot.slane %v744, 2
          %v746 = vadd.f32 %v744, %v745
          %v747 = vrot.slane %v746, 1
          %v748 = vadd.f32 %v746, %v747
          %v749 = vmul.f32 %v741, %v728
          %v750 = vmul.f32 %v748, %v728
          %v751 = vadd.f32 %v749, 1e-05
          %v752 = vadd.f32 %v750, 1e-05
          %v753 = vrsqrt.pop %v751
          %v754 = vmul.f32 %v753, %v751
          %v755 = vmul.f32 %v754, %v753
          %v756 = vmul.f32 0.5, %v755
          %v757 = vsub.f32 1.5, %v756
          %v758 = vmul.f32 %v753, %v757
          %vm759 = vweird.f32 %v751
          %vm760 = vweird.f32 %v753
          %vm761 = vmor %vm759, %vm760
          %v762 = vsel %vm761, %v753, %v758
          %v763 = vrsqrt.pop %v752
          %v764 = vmul.f32 %v763, %v752
          %v765 = vmul.f32 %v764, %v763
          %v766 = vmul.f32 0.5, %v765
          %v767 = vsub.f32 1.5, %v766
          %v768 = vmul.f32 %v763, %v767
          %vm769 = vweird.f32 %v752
          %vm770 = vweird.f32 %v763
          %vm771 = vmor %vm769, %vm770
          %v772 = vsel %vm771, %v763, %v768
          %v773 = vmul.f32 %v731, %v762
          %v774 = vmul.f32 %v732, %v772
          %v776 = vrot.slane %v773, 7
          %s777 = vtos %v776
          %v778 = vstv %s777
          %vm780 = vcmp.eq.f32.partialorder %v773, %v778
          %vm781 = vcmp.eq.f32.partialorder %v774, %v778
          %v782 = vsel %vm780, 1, 0
          %v783 = vsel %vm781, 1, 0
          %v784 = vcvt.s32.f32 %v782
          %v785 = vcvt.s32.f32 %v783
          %v786 = vsel %vm707, %v784, 0.0
          %v787 = vsel %vm707, %v785, 0.0
          %v788 = vadd.f32 %v786, %v787
          %789 = vadd.xlane.f32.xlu0 %v788
          %v790 = vpop.xlane.xlu0 %789
          %v791 = vrot.slane %v790, 4
          %v792 = vadd.f32 %v790, %v791
          %v793 = vrot.slane %v792, 2
          %v794 = vadd.f32 %v792, %v793
          %v795 = vrot.slane %v794, 1
          %v796 = vadd.f32 %v794, %v795
          %s797 = vtos %v796
          %v798 = vstv %s797
          %vm799 = vcmp.ge.f32.partialorder %v798, 16.0
          %v800 = vsel %vm799, 1, 0
          %vm801 = vcmp.eq.s32.totalorder %v800, 1
          %vm802 = vmand %vm780, %vm801
          %vm803 = vmand %vm781, %vm801
          %v804 = vsel %vm802, 0.0, %v773
          %v805 = vsel %vm803, 0.0, %v774
          %vm806 = vcmp.eq.f32.partialorder %v804, 0.0
          %vm807 = vcmp.eq.f32.partialorder %v805, 0.0
          %v808 = vsel %vm806, 1.0, 0.0
          %v809 = vsel %vm807, 1.0, 0.0
          %v810 = vld [vmem:[#allocation6] sm:$0xff]
          %v811 = vadd.f32 %v804, %v810
          %v812 = vadd.f32 %v805, %v810
          %vm813 = vcmp.gt.f32.partialorder %v808, 0.5
          %vm814 = vcmp.gt.f32.partialorder %v809, 0.5
          %v815 = vsel %vm813, 1, 0
          %v816 = vsel %vm814, 1, 0
          %817 = vset.pattern.permute.xlu0 0
          %818 = vperm.xlu0 %817, %v815
          %v819 = vpop.permute.xlu0 %818
          %820 = vset.pattern.permute.xlu0 0
          %821 = vperm.xlu0 %820, %v816
          %v822 = vpop.permute.xlu0 %821
          %vm823 = vcmp.eq.s32.totalorder %v819, 1
          %vm824 = vcmp.eq.s32.totalorder %v822, 1
          %v825 = vsel %vm823, 0.0, %v811
          %v826 = vsel %vm824, 0.0, %v812
          %827 = vst.msk [vmem:[#allocation2] sm:$0xff] %vm707, %v825
          %828 = vst.msk [vmem:[#allocation2 + $0x8] sm:$0xff] %vm707, %v826
          %vm829 = vcmask 7168
          %830 = vst.msk [vmem:[#allocation3] sm:$0xff] %vm829, %v808
          %831 = vst.msk [vmem:[#allocation3 + $0x8] sm:$0xff] %vm829, %v809
          %832 = vxpose.xlu0.b32.start [1/16] %v808, 128
          %833 = vxpose.xlu0.b32.cont [2/16] 0.0, 128
          %834 = vxpose.xlu0.b32.cont [3/16] 0.0, 128
          %835 = vxpose.xlu0.b32.cont [4/16] 0.0, 128
          %836 = vxpose.xlu0.b32.cont [5/16] 0.0, 128
          %837 = vxpose.xlu0.b32.cont [6/16] 0.0, 128
          %838 = vxpose.xlu0.b32.cont [7/16] 0.0, 128
          %839 = vxpose.xlu0.b32.cont [8/16] 0.0, 128
          %840 = vxpose.xlu0.b32.cont [9/16] 0.0, 128
          %841 = vxpose.xlu0.b32.cont [10/16] 0.0, 128
          %842 = vxpose.xlu0.b32.cont [11/16] 0.0, 128
          %843 = vxpose.xlu0.b32.cont [12/16] 0.0, 128
          %844 = vxpose.xlu0.b32.cont [13/16] 0.0, 128
          %845 = vxpose.xlu0.b32.cont [14/16] 0.0, 128
          %846 = vxpose.xlu0.b32.cont [15/16] 0.0, 128
          %847 = vxpose.xlu0.b32.end [16/16] 0.0, 128
          %v848 = vpop.trf.xlu0
          %v849 = vpop.trf.xlu0
          %v850 = vpop.trf.xlu0
          %v851 = vpop.trf.xlu0
          %v852 = vpop.trf.xlu0
          %v853 = vpop.trf.xlu0
          %v854 = vpop.trf.xlu0
          %v855 = vpop.trf.xlu0
          %v856 = vpop.trf.xlu0
          %v857 = vpop.trf.xlu0
          %v858 = vpop.trf.xlu0
          %v859 = vpop.trf.xlu0
          %v860 = vpop.trf.xlu0
          %v861 = vpop.trf.xlu0
          %v862 = vpop.trf.xlu0
          %v863 = vpop.trf.xlu0
          %864 = vxpose.xlu0.b32.start [1/16] %v809, 128
          %865 = vxpose.xlu0.b32.cont [2/16] 0.0, 128
          %866 = vxpose.xlu0.b32.cont [3/16] 0.0, 128
          %867 = vxpose.xlu0.b32.cont [4/16] 0.0, 128
          %868 = vxpose.xlu0.b32.cont [5/16] 0.0, 128
          %869 = vxpose.xlu0.b32.cont [6/16] 0.0, 128
          %870 = vxpose.xlu0.b32.cont [7/16] 0.0, 128
          %871 = vxpose.xlu0.b32.cont [8/16] 0.0, 128
          %872 = vxpose.xlu0.b32.cont [9/16] 0.0, 128
          %873 = vxpose.xlu0.b32.cont [10/16] 0.0, 128
          %874 = vxpose.xlu0.b32.cont [11/16] 0.0, 128
          %875 = vxpose.xlu0.b32.cont [12/16] 0.0, 128
          %876 = vxpose.xlu0.b32.cont [13/16] 0.0, 128
          %877 = vxpose.xlu0.b32.cont [14/16] 0.0, 128
          %878 = vxpose.xlu0.b32.cont [15/16] 0.0, 128
          %879 = vxpose.xlu0.b32.end [16/16] 0.0, 128
          %v880 = vpop.trf.xlu0
          %v881 = vpop.trf.xlu0
          %v882 = vpop.trf.xlu0
          %v883 = vpop.trf.xlu0
          %v884 = vpop.trf.xlu0
          %v885 = vpop.trf.xlu0
          %v886 = vpop.trf.xlu0
          %v887 = vpop.trf.xlu0
          %v888 = vpop.trf.xlu0
          %v889 = vpop.trf.xlu0
          %v890 = vpop.trf.xlu0
          %v891 = vpop.trf.xlu0
          %v892 = vpop.trf.xlu0
          %v893 = vpop.trf.xlu0
          %v894 = vpop.trf.xlu0
          %v895 = vpop.trf.xlu0
          %vm896 = vcmp.gt.f32.partialorder %v848, 0.5
          %vm897 = vcmp.gt.f32.partialorder %v880, 0.5
          %v898 = vsel %vm896, -1e+30, 0.0
          %v899 = vsel %vm897, -1e+30, 0.0
          %v900 = vperm.slane %v898, 0
          %v901 = vperm.slane %v899, 0
          %v904 = vrot.slane %v900, 1
          %v905 = vrot.slane %v901, 1
          %vm908 = vcmask 57344
          %909 = vst.msk [vmem:[#allocation4] sm:$0x1] %vm908, %v900
          %910 = vst.msk [vmem:[#allocation4 + $0x1] sm:$0x1] %vm908, %v904
          %911 = vst.msk [vmem:[#allocation4 + $0x2] sm:$0x1] %vm908, %v901
          %912 = vst.msk [vmem:[#allocation4 + $0x3] sm:$0x1] %vm908, %v905
        $region92: #{tpu_custom_call.1} parent=71 // pred_fallthru
          _
        %v913 = vld [vmem:[#allocation2] sm:$0xff]
        %v914 = vld [vmem:[#allocation2 + $0x8] sm:$0xff]
        %v915 = vpack.c.bf16 %v914, %v913
        %v916 = vld [vmem:[%s647] sm:$0xf]
        %v917 = vld [vmem:[%s647 + $0x4] sm:$0xf]
        %v918 = vld [vmem:[%s650] sm:$0x1]
        %v920 = vperm.slane %v918, 0
        %v924 = vunpack.c.l.b16 %v916
        %v925 = vunpack.c.l.b16 %v917
        %v926 = vpack.c.b16 %v925, %v924
        %vm928 = vcmask 130048
        %v930 = vsel %vm928, %v915, 0
        %932 = vmatpush.bf16.msra.mxu0 0
        %933 = vmatpush.bf16.msra.mxu0 0
        %934 = vmatpush.bf16.msra.mxu0 0
        %935 = vmatpush.bf16.msra.mxu0 0
        %936 = vmatpush.bf16.msra.mxu0 0
        %937 = vmatpush.bf16.msra.mxu0 0
        %938 = vmatpush.bf16.msra.mxu0 0
        %939 = vmatpush.bf16.msra.mxu0 %v926
        %940 = vmatmul.bf16.gmra.mxu0 %v930
        %v941 = vpop.f32.mrf.mxu0
        %v942 = vadd.f32 %v920, %v941
        %v943 = vpop.f32.mrf.mxu0
        %v944 = vadd.f32 %v920, %v943
        %945 = vdwg.mxu0
        %946 = vxpose.xlu0.b32.start [1/16] %v942, 128
        %947 = vxpose.xlu0.b32.cont [2/16] 0.0, 128
        %948 = vxpose.xlu0.b32.cont [3/16] 0.0, 128
        %949 = vxpose.xlu0.b32.cont [4/16] 0.0, 128
        %950 = vxpose.xlu0.b32.cont [5/16] 0.0, 128
        %951 = vxpose.xlu0.b32.cont [6/16] 0.0, 128
        %952 = vxpose.xlu0.b32.cont [7/16] 0.0, 128
        %953 = vxpose.xlu0.b32.cont [8/16] 0.0, 128
        %954 = vxpose.xlu0.b32.cont [9/16] 0.0, 128
        %955 = vxpose.xlu0.b32.cont [10/16] 0.0, 128
        %956 = vxpose.xlu0.b32.cont [11/16] 0.0, 128
        %957 = vxpose.xlu0.b32.cont [12/16] 0.0, 128
        %958 = vxpose.xlu0.b32.cont [13/16] 0.0, 128
        %959 = vxpose.xlu0.b32.cont [14/16] 0.0, 128
        %960 = vxpose.xlu0.b32.cont [15/16] 0.0, 128
        %961 = vxpose.xlu0.b32.end [16/16] 0.0, 128
        %v962 = vpop.trf.xlu0
        %v963 = vpop.trf.xlu0
        %v964 = vpop.trf.xlu0
        %v965 = vpop.trf.xlu0
        %v966 = vpop.trf.xlu0
        %v967 = vpop.trf.xlu0
        %v968 = vpop.trf.xlu0
        %v969 = vpop.trf.xlu0
        %v970 = vpop.trf.xlu0
        %v971 = vpop.trf.xlu0
        %v972 = vpop.trf.xlu0
        %v973 = vpop.trf.xlu0
        %v974 = vpop.trf.xlu0
        %v975 = vpop.trf.xlu0
        %v976 = vpop.trf.xlu0
        %v977 = vpop.trf.xlu0
        %978 = vxpose.xlu0.b32.start [1/16] %v944, 128
        %979 = vxpose.xlu0.b32.cont [2/16] 0.0, 128
        %980 = vxpose.xlu0.b32.cont [3/16] 0.0, 128
        %981 = vxpose.xlu0.b32.cont [4/16] 0.0, 128
        %982 = vxpose.xlu0.b32.cont [5/16] 0.0, 128
        %983 = vxpose.xlu0.b32.cont [6/16] 0.0, 128
        %984 = vxpose.xlu0.b32.cont [7/16] 0.0, 128
        %985 = vxpose.xlu0.b32.cont [8/16] 0.0, 128
        %986 = vxpose.xlu0.b32.cont [9/16] 0.0, 128
        %987 = vxpose.xlu0.b32.cont [10/16] 0.0, 128
        %988 = vxpose.xlu0.b32.cont [11/16] 0.0, 128
        %989 = vxpose.xlu0.b32.cont [12/16] 0.0, 128
        %990 = vxpose.xlu0.b32.cont [13/16] 0.0, 128
        %991 = vxpose.xlu0.b32.cont [14/16] 0.0, 128
        %992 = vxpose.xlu0.b32.cont [15/16] 0.0, 128
        %993 = vxpose.xlu0.b32.end [16/16] 0.0, 128
        %v994 = vpop.trf.xlu0
        %v995 = vpop.trf.xlu0
        %v996 = vpop.trf.xlu0
        %v997 = vpop.trf.xlu0
        %v998 = vpop.trf.xlu0
        %v999 = vpop.trf.xlu0
        %v1000 = vpop.trf.xlu0
        %v1001 = vpop.trf.xlu0
        %v1002 = vpop.trf.xlu0
        %v1003 = vpop.trf.xlu0
        %v1004 = vpop.trf.xlu0
        %v1005 = vpop.trf.xlu0
        %v1006 = vpop.trf.xlu0
        %v1007 = vpop.trf.xlu0
        %v1008 = vpop.trf.xlu0
        %v1009 = vpop.trf.xlu0
        %1010 = vxpose.xlu0.b32.start [1/16] %v962, 128
        %1011 = vxpose.xlu0.b32.cont [2/16] 0.0, 128
        %1012 = vxpose.xlu0.b32.cont [3/16] 0.0, 128
        %1013 = vxpose.xlu0.b32.cont [4/16] 0.0, 128
        %1014 = vxpose.xlu0.b32.cont [5/16] 0.0, 128
        %1015 = vxpose.xlu0.b32.cont [6/16] 0.0, 128
        %1016 = vxpose.xlu0.b32.cont [7/16] 0.0, 128
        %1017 = vxpose.xlu0.b32.cont [8/16] 0.0, 128
        %1018 = vxpose.xlu0.b32.cont [9/16] 0.0, 128
        %1019 = vxpose.xlu0.b32.cont [10/16] 0.0, 128
        %1020 = vxpose.xlu0.b32.cont [11/16] 0.0, 128
        %1021 = vxpose.xlu0.b32.cont [12/16] 0.0, 128
        %1022 = vxpose.xlu0.b32.cont [13/16] 0.0, 128
        %1023 = vxpose.xlu0.b32.cont [14/16] 0.0, 128
        %1024 = vxpose.xlu0.b32.cont [15/16] 0.0, 128
        %1025 = vxpose.xlu0.b32.end [16/16] 0.0, 128
        %v1026 = vpop.trf.xlu0
        %v1027 = vpop.trf.xlu0
        %v1028 = vpop.trf.xlu0
        %v1029 = vpop.trf.xlu0
        %v1030 = vpop.trf.xlu0
        %v1031 = vpop.trf.xlu0
        %v1032 = vpop.trf.xlu0
        %v1033 = vpop.trf.xlu0
        %v1034 = vpop.trf.xlu0
        %v1035 = vpop.trf.xlu0
        %v1036 = vpop.trf.xlu0
        %v1037 = vpop.trf.xlu0
        %v1038 = vpop.trf.xlu0
        %v1039 = vpop.trf.xlu0
        %v1040 = vpop.trf.xlu0
        %v1041 = vpop.trf.xlu0
        %1042 = vxpose.xlu0.b32.start [1/16] %v963, 128
        %1043 = vxpose.xlu0.b32.cont [2/16] 0.0, 128
        %1044 = vxpose.xlu0.b32.cont [3/16] 0.0, 128
        %1045 = vxpose.xlu0.b32.cont [4/16] 0.0, 128
        %1046 = vxpose.xlu0.b32.cont [5/16] 0.0, 128
        %1047 = vxpose.xlu0.b32.cont [6/16] 0.0, 128
        %1048 = vxpose.xlu0.b32.cont [7/16] 0.0, 128
        %1049 = vxpose.xlu0.b32.cont [8/16] 0.0, 128
        %1050 = vxpose.xlu0.b32.cont [9/16] 0.0, 128
        %1051 = vxpose.xlu0.b32.cont [10/16] 0.0, 128
        %1052 = vxpose.xlu0.b32.cont [11/16] 0.0, 128
        %1053 = vxpose.xlu0.b32.cont [12/16] 0.0, 128
        %1054 = vxpose.xlu0.b32.cont [13/16] 0.0, 128
        %1055 = vxpose.xlu0.b32.cont [14/16] 0.0, 128
        %1056 = vxpose.xlu0.b32.cont [15/16] 0.0, 128
        %1057 = vxpose.xlu0.b32.end [16/16] 0.0, 128
        %v1058 = vpop.trf.xlu0
        %v1059 = vpop.trf.xlu0
        %v1060 = vpop.trf.xlu0
        %v1061 = vpop.trf.xlu0
        %v1062 = vpop.trf.xlu0
        %v1063 = vpop.trf.xlu0
        %v1064 = vpop.trf.xlu0
        %v1065 = vpop.trf.xlu0
        %v1066 = vpop.trf.xlu0
        %v1067 = vpop.trf.xlu0
        %v1068 = vpop.trf.xlu0
        %v1069 = vpop.trf.xlu0
        %v1070 = vpop.trf.xlu0
        %v1071 = vpop.trf.xlu0
        %v1072 = vpop.trf.xlu0
        %v1073 = vpop.trf.xlu0
        %1074 = vxpose.xlu0.b32.start [1/16] %v994, 128
        %1075 = vxpose.xlu0.b32.cont [2/16] 0.0, 128
        %1076 = vxpose.xlu0.b32.cont [3/16] 0.0, 128
        %1077 = vxpose.xlu0.b32.cont [4/16] 0.0, 128
        %1078 = vxpose.xlu0.b32.cont [5/16] 0.0, 128
        %1079 = vxpose.xlu0.b32.cont [6/16] 0.0, 128
        %1080 = vxpose.xlu0.b32.cont [7/16] 0.0, 128
        %1081 = vxpose.xlu0.b32.cont [8/16] 0.0, 128
        %1082 = vxpose.xlu0.b32.cont [9/16] 0.0, 128
        %1083 = vxpose.xlu0.b32.cont [10/16] 0.0, 128
        %1084 = vxpose.xlu0.b32.cont [11/16] 0.0, 128
        %1085 = vxpose.xlu0.b32.cont [12/16] 0.0, 128
        %1086 = vxpose.xlu0.b32.cont [13/16] 0.0, 128
        %1087 = vxpose.xlu0.b32.cont [14/16] 0.0, 128
        %1088 = vxpose.xlu0.b32.cont [15/16] 0.0, 128
        %1089 = vxpose.xlu0.b32.end [16/16] 0.0, 128
        %v1090 = vpop.trf.xlu0
        %v1091 = vpop.trf.xlu0
        %v1092 = vpop.trf.xlu0
        %v1093 = vpop.trf.xlu0
        %v1094 = vpop.trf.xlu0
        %v1095 = vpop.trf.xlu0
        %v1096 = vpop.trf.xlu0
        %v1097 = vpop.trf.xlu0
        %v1098 = vpop.trf.xlu0
        %v1099 = vpop.trf.xlu0
        %v1100 = vpop.trf.xlu0
        %v1101 = vpop.trf.xlu0
        %v1102 = vpop.trf.xlu0
        %v1103 = vpop.trf.xlu0
        %v1104 = vpop.trf.xlu0
        %v1105 = vpop.trf.xlu0
        %1106 = vxpose.xlu0.b32.start [1/16] %v995, 128
        %1107 = vxpose.xlu0.b32.cont [2/16] 0.0, 128
        %1108 = vxpose.xlu0.b32.cont [3/16] 0.0, 128
        %1109 = vxpose.xlu0.b32.cont [4/16] 0.0, 128
        %1110 = vxpose.xlu0.b32.cont [5/16] 0.0, 128
        %1111 = vxpose.xlu0.b32.cont [6/16] 0.0, 128
        %1112 = vxpose.xlu0.b32.cont [7/16] 0.0, 128
        %1113 = vxpose.xlu0.b32.cont [8/16] 0.0, 128
        %1114 = vxpose.xlu0.b32.cont [9/16] 0.0, 128
        %1115 = vxpose.xlu0.b32.cont [10/16] 0.0, 128
        %1116 = vxpose.xlu0.b32.cont [11/16] 0.0, 128
        %1117 = vxpose.xlu0.b32.cont [12/16] 0.0, 128
        %1118 = vxpose.xlu0.b32.cont [13/16] 0.0, 128
        %1119 = vxpose.xlu0.b32.cont [14/16] 0.0, 128
        %1120 = vxpose.xlu0.b32.cont [15/16] 0.0, 128
        %1121 = vxpose.xlu0.b32.end [16/16] 0.0, 128
        %v1122 = vpop.trf.xlu0
        %v1123 = vpop.trf.xlu0
        %v1124 = vpop.trf.xlu0
        %v1125 = vpop.trf.xlu0
        %v1126 = vpop.trf.xlu0
        %v1127 = vpop.trf.xlu0
        %v1128 = vpop.trf.xlu0
        %v1129 = vpop.trf.xlu0
        %v1130 = vpop.trf.xlu0
        %v1131 = vpop.trf.xlu0
        %v1132 = vpop.trf.xlu0
        %v1133 = vpop.trf.xlu0
        %v1134 = vpop.trf.xlu0
        %v1135 = vpop.trf.xlu0
        %v1136 = vpop.trf.xlu0
        %v1137 = vpop.trf.xlu0
        %1140 = vrot.lane.b32.xlu0 %v942, 112
        %v1141 = vpop.permute.xlu0 %1140
        %1142 = vrot.lane.b32.xlu0 %v944, 112
        %v1143 = vpop.permute.xlu0 %1142
        %1146 = vxpose.xlu0.b32.start [1/16] %v1141, 128
        %1147 = vxpose.xlu0.b32.cont [2/16] 0.0, 128
        %1148 = vxpose.xlu0.b32.cont [3/16] 0.0, 128
        %1149 = vxpose.xlu0.b32.cont [4/16] 0.0, 128
        %1150 = vxpose.xlu0.b32.cont [5/16] 0.0, 128
        %1151 = vxpose.xlu0.b32.cont [6/16] 0.0, 128
        %1152 = vxpose.xlu0.b32.cont [7/16] 0.0, 128
        %1153 = vxpose.xlu0.b32.cont [8/16] 0.0, 128
        %1154 = vxpose.xlu0.b32.cont [9/16] 0.0, 128
        %1155 = vxpose.xlu0.b32.cont [10/16] 0.0, 128
        %1156 = vxpose.xlu0.b32.cont [11/16] 0.0, 128
        %1157 = vxpose.xlu0.b32.cont [12/16] 0.0, 128
        %1158 = vxpose.xlu0.b32.cont [13/16] 0.0, 128
        %1159 = vxpose.xlu0.b32.cont [14/16] 0.0, 128
        %1160 = vxpose.xlu0.b32.cont [15/16] 0.0, 128
        %1161 = vxpose.xlu0.b32.end [16/16] 0.0, 128
        %v1162 = vpop.trf.xlu0
        %v1163 = vpop.trf.xlu0
        %v1164 = vpop.trf.xlu0
        %v1165 = vpop.trf.xlu0
        %v1166 = vpop.trf.xlu0
        %v1167 = vpop.trf.xlu0
        %v1168 = vpop.trf.xlu0
        %v1169 = vpop.trf.xlu0
        %v1170 = vpop.trf.xlu0
        %v1171 = vpop.trf.xlu0
        %v1172 = vpop.trf.xlu0
        %v1173 = vpop.trf.xlu0
        %v1174 = vpop.trf.xlu0
        %v1175 = vpop.trf.xlu0
        %v1176 = vpop.trf.xlu0
        %v1177 = vpop.trf.xlu0
        %1178 = vxpose.xlu0.b32.start [1/16] %v1143, 128
        %1179 = vxpose.xlu0.b32.cont [2/16] 0.0, 128
        %1180 = vxpose.xlu0.b32.cont [3/16] 0.0, 128
        %1181 = vxpose.xlu0.b32.cont [4/16] 0.0, 128
        %1182 = vxpose.xlu0.b32.cont [5/16] 0.0, 128
        %1183 = vxpose.xlu0.b32.cont [6/16] 0.0, 128
        %1184 = vxpose.xlu0.b32.cont [7/16] 0.0, 128
        %1185 = vxpose.xlu0.b32.cont [8/16] 0.0, 128
        %1186 = vxpose.xlu0.b32.cont [9/16] 0.0, 128
        %1187 = vxpose.xlu0.b32.cont [10/16] 0.0, 128
        %1188 = vxpose.xlu0.b32.cont [11/16] 0.0, 128
        %1189 = vxpose.xlu0.b32.cont [12/16] 0.0, 128
        %1190 = vxpose.xlu0.b32.cont [13/16] 0.0, 128
        %1191 = vxpose.xlu0.b32.cont [14/16] 0.0, 128
        %1192 = vxpose.xlu0.b32.cont [15/16] 0.0, 128
        %1193 = vxpose.xlu0.b32.end [16/16] 0.0, 128
        %v1194 = vpop.trf.xlu0
        %v1195 = vpop.trf.xlu0
        %v1196 = vpop.trf.xlu0
        %v1197 = vpop.trf.xlu0
        %v1198 = vpop.trf.xlu0
        %v1199 = vpop.trf.xlu0
        %v1200 = vpop.trf.xlu0
        %v1201 = vpop.trf.xlu0
        %v1202 = vpop.trf.xlu0
        %v1203 = vpop.trf.xlu0
        %v1204 = vpop.trf.xlu0
        %v1205 = vpop.trf.xlu0
        %v1206 = vpop.trf.xlu0
        %v1207 = vpop.trf.xlu0
        %v1208 = vpop.trf.xlu0
        %v1209 = vpop.trf.xlu0
        %1210 = vrot.lane.b32.xlu0 %v942, 96
        %v1211 = vpop.permute.xlu0 %1210
        %1212 = vrot.lane.b32.xlu0 %v944, 96
        %v1213 = vpop.permute.xlu0 %1212
        %1216 = vxpose.xlu0.b32.start [1/16] %v1211, 128
        %1217 = vxpose.xlu0.b32.cont [2/16] 0.0, 128
        %1218 = vxpose.xlu0.b32.cont [3/16] 0.0, 128
        %1219 = vxpose.xlu0.b32.cont [4/16] 0.0, 128
        %1220 = vxpose.xlu0.b32.cont [5/16] 0.0, 128
        %1221 = vxpose.xlu0.b32.cont [6/16] 0.0, 128
        %1222 = vxpose.xlu0.b32.cont [7/16] 0.0, 128
        %1223 = vxpose.xlu0.b32.cont [8/16] 0.0, 128
        %1224 = vxpose.xlu0.b32.cont [9/16] 0.0, 128
        %1225 = vxpose.xlu0.b32.cont [10/16] 0.0, 128
        %1226 = vxpose.xlu0.b32.cont [11/16] 0.0, 128
        %1227 = vxpose.xlu0.b32.cont [12/16] 0.0, 128
        %1228 = vxpose.xlu0.b32.cont [13/16] 0.0, 128
        %1229 = vxpose.xlu0.b32.cont [14/16] 0.0, 128
        %1230 = vxpose.xlu0.b32.cont [15/16] 0.0, 128
        %1231 = vxpose.xlu0.b32.end [16/16] 0.0, 128
        %v1232 = vpop.trf.xlu0
        %v1233 = vpop.trf.xlu0
        %v1234 = vpop.trf.xlu0
        %v1235 = vpop.trf.xlu0
        %v1236 = vpop.trf.xlu0
        %v1237 = vpop.trf.xlu0
        %v1238 = vpop.trf.xlu0
        %v1239 = vpop.trf.xlu0
        %v1240 = vpop.trf.xlu0
        %v1241 = vpop.trf.xlu0
        %v1242 = vpop.trf.xlu0
        %v1243 = vpop.trf.xlu0
        %v1244 = vpop.trf.xlu0
        %v1245 = vpop.trf.xlu0
        %v1246 = vpop.trf.xlu0
        %v1247 = vpop.trf.xlu0
        %1248 = vxpose.xlu0.b32.start [1/16] %v1213, 128
        %1249 = vxpose.xlu0.b32.cont [2/16] 0.0, 128
        %1250 = vxpose.xlu0.b32.cont [3/16] 0.0, 128
        %1251 = vxpose.xlu0.b32.cont [4/16] 0.0, 128
        %1252 = vxpose.xlu0.b32.cont [5/16] 0.0, 128
        %1253 = vxpose.xlu0.b32.cont [6/16] 0.0, 128
        %1254 = vxpose.xlu0.b32.cont [7/16] 0.0, 128
        %1255 = vxpose.xlu0.b32.cont [8/16] 0.0, 128
        %1256 = vxpose.xlu0.b32.cont [9/16] 0.0, 128
        %1257 = vxpose.xlu0.b32.cont [10/16] 0.0, 128
        %1258 = vxpose.xlu0.b32.cont [11/16] 0.0, 128
        %1259 = vxpose.xlu0.b32.cont [12/16] 0.0, 128
        %1260 = vxpose.xlu0.b32.cont [13/16] 0.0, 128
        %1261 = vxpose.xlu0.b32.cont [14/16] 0.0, 128
        %1262 = vxpose.xlu0.b32.cont [15/16] 0.0, 128
        %1263 = vxpose.xlu0.b32.end [16/16] 0.0, 128
        %v1264 = vpop.trf.xlu0
        %v1265 = vpop.trf.xlu0
        %v1266 = vpop.trf.xlu0
        %v1267 = vpop.trf.xlu0
        %v1268 = vpop.trf.xlu0
        %v1269 = vpop.trf.xlu0
        %v1270 = vpop.trf.xlu0
        %v1271 = vpop.trf.xlu0
        %v1272 = vpop.trf.xlu0
        %v1273 = vpop.trf.xlu0
        %v1274 = vpop.trf.xlu0
        %v1275 = vpop.trf.xlu0
        %v1276 = vpop.trf.xlu0
        %v1277 = vpop.trf.xlu0
        %v1278 = vpop.trf.xlu0
        %v1279 = vpop.trf.xlu0
        %vm1280 = vcmask 64512
        %v1282 = vsel %vm1280, %v1026, 0
        %1284 = vmatpush.msra.mxu0 0.0
        %1285 = vmatpush.msra.mxu0 0.0
        %1286 = vmatpush.msra.mxu0 0.0
        %1287 = vmatpush.msra.mxu0 0.0
        %1288 = vmatpush.msra.mxu0 0.0
        %1289 = vmatpush.msra.mxu0 0.0
        %1290 = vmatpush.msra.mxu0 0.0
        %1291 = vmatpush.msra.mxu0 0.0
        %1292 = vmatpush.msra.mxu0 0.0
        %1293 = vmatpush.msra.mxu0 0.0
        %1294 = vmatpush.msra.mxu0 0.0
        %1295 = vmatpush.msra.mxu0 0.0
        %1296 = vmatpush.msra.mxu0 0.0
        %1297 = vmatpush.msra.mxu0 0.0
        %1298 = vmatpush.msra.mxu0 0.0
        %1299 = vmatpush.msra.mxu0 %v1162
        %1300 = vmatmul.f32.gmra.mxu0 %v1282
        %v1301 = vpop.f32.mrf.mxu0
        %v1302 = vadd.f32 0.0, %v1301
        %1303 = vdwg.mxu0
        %v1305 = vsel %vm1280, %v1058, 0
        %1307 = vmatpush.msra.mxu0 0.0
        %1308 = vmatpush.msra.mxu0 0.0
        %1309 = vmatpush.msra.mxu0 0.0
        %1310 = vmatpush.msra.mxu0 0.0
        %1311 = vmatpush.msra.mxu0 0.0
        %1312 = vmatpush.msra.mxu0 0.0
        %1313 = vmatpush.msra.mxu0 0.0
        %1314 = vmatpush.msra.mxu0 0.0
        %1315 = vmatpush.msra.mxu0 0.0
        %1316 = vmatpush.msra.mxu0 0.0
        %1317 = vmatpush.msra.mxu0 0.0
        %1318 = vmatpush.msra.mxu0 0.0
        %1319 = vmatpush.msra.mxu0 0.0
        %1320 = vmatpush.msra.mxu0 0.0
        %1321 = vmatpush.msra.mxu0 0.0
        %1322 = vmatpush.msra.mxu0 %v1163
        %1323 = vmatmul.f32.gmra.mxu0 %v1305
        %v1324 = vpop.f32.mrf.mxu0
        %v1325 = vadd.f32 0.0, %v1324
        %1326 = vdwg.mxu0
        %v1328 = vsel %vm1280, %v1090, 0
        %1330 = vmatpush.msra.mxu0 0.0
        %1331 = vmatpush.msra.mxu0 0.0
        %1332 = vmatpush.msra.mxu0 0.0
        %1333 = vmatpush.msra.mxu0 0.0
        %1334 = vmatpush.msra.mxu0 0.0
        %1335 = vmatpush.msra.mxu0 0.0
        %1336 = vmatpush.msra.mxu0 0.0
        %1337 = vmatpush.msra.mxu0 0.0
        %1338 = vmatpush.msra.mxu0 0.0
        %1339 = vmatpush.msra.mxu0 0.0
        %1340 = vmatpush.msra.mxu0 0.0
        %1341 = vmatpush.msra.mxu0 0.0
        %1342 = vmatpush.msra.mxu0 0.0
        %1343 = vmatpush.msra.mxu0 0.0
        %1344 = vmatpush.msra.mxu0 0.0
        %1345 = vmatpush.msra.mxu0 %v1194
        %1346 = vmatmul.f32.gmra.mxu0 %v1328
        %v1347 = vpop.f32.mrf.mxu0
        %v1348 = vadd.f32 0.0, %v1347
        %1349 = vdwg.mxu0
        %v1351 = vsel %vm1280, %v1122, 0
        %1353 = vmatpush.msra.mxu0 0.0
        %1354 = vmatpush.msra.mxu0 0.0
        %1355 = vmatpush.msra.mxu0 0.0
        %1356 = vmatpush.msra.mxu0 0.0
        %1357 = vmatpush.msra.mxu0 0.0
        %1358 = vmatpush.msra.mxu0 0.0
        %1359 = vmatpush.msra.mxu0 0.0
        %1360 = vmatpush.msra.mxu0 0.0
        %1361 = vmatpush.msra.mxu0 0.0
        %1362 = vmatpush.msra.mxu0 0.0
        %1363 = vmatpush.msra.mxu0 0.0
        %1364 = vmatpush.msra.mxu0 0.0
        %1365 = vmatpush.msra.mxu0 0.0
        %1366 = vmatpush.msra.mxu0 0.0
        %1367 = vmatpush.msra.mxu0 0.0
        %1368 = vmatpush.msra.mxu0 %v1195
        %1369 = vmatmul.f32.gmra.mxu0 %v1351
        %v1370 = vpop.f32.mrf.mxu0
        %v1371 = vadd.f32 0.0, %v1370
        %1372 = vdwg.mxu0
        %v1373 = vmul.f32 %v1302, 0.35355338
        %v1374 = vmul.f32 %v1325, 0.35355338
        %v1375 = vmul.f32 %v1348, 0.35355338
        %v1376 = vmul.f32 %v1371, 0.35355338
        %v1377 = vld [vmem:[#allocation4] sm:$0x1]
        %v1378 = vld [vmem:[#allocation4 + $0x1] sm:$0x1]
        %v1379 = vld [vmem:[#allocation4 + $0x2] sm:$0x1]
        %v1380 = vld [vmem:[#allocation4 + $0x3] sm:$0x1]
        %v1385 = vperm.slane %v1377, 0
        %v1386 = vperm.slane %v1378, 0
        %v1387 = vperm.slane %v1379, 0
        %v1388 = vperm.slane %v1380, 0
        %v1393 = vadd.f32 %v1373, %v1385
        %v1394 = vadd.f32 %v1374, %v1386
        %v1395 = vadd.f32 %v1375, %v1387
        %v1396 = vadd.f32 %v1376, %v1388
        %v1397 = vsel %vm1280, %v1393, -inf
        %1398 = vmax.xlane.f32.xlu0 %v1397
        %v1399 = vpop.xlane.xlu0 %1398
        %v1400 = vsel %vm1280, %v1394, -inf
        %1401 = vmax.xlane.f32.xlu0 %v1400
        %v1402 = vpop.xlane.xlu0 %1401
        %v1403 = vsel %vm1280, %v1395, -inf
        %1404 = vmax.xlane.f32.xlu0 %v1403
        %v1405 = vpop.xlane.xlu0 %1404
        %v1406 = vsel %vm1280, %v1396, -inf
        %1407 = vmax.xlane.f32.xlu0 %v1406
        %v1408 = vpop.xlane.xlu0 %1407
        %v1409 = vsub.f32 %v1393, %v1399
        %v1410 = vsub.f32 %v1394, %v1402
        %v1411 = vsub.f32 %v1395, %v1405
        %v1412 = vsub.f32 %v1396, %v1408
        %v1413 = vmul.f32 %v1409, 1.442695
        %v1414 = vpow.pop %v1413
        %v1415 = vmul.f32 %v1410, 1.442695
        %v1416 = vpow.pop %v1415
        %v1417 = vmul.f32 %v1411, 1.442695
        %v1418 = vpow.pop %v1417
        %v1419 = vmul.f32 %v1412, 1.442695
        %v1420 = vpow.pop %v1419
        %v1421 = vsel %vm1280, %v1414, 0.0
        %1422 = vadd.xlane.f32.xlu0 %v1421
        %v1423 = vpop.xlane.xlu0 %1422
        %v1424 = vsel %vm1280, %v1416, 0.0
        %1425 = vadd.xlane.f32.xlu0 %v1424
        %v1426 = vpop.xlane.xlu0 %1425
        %v1427 = vsel %vm1280, %v1418, 0.0
        %1428 = vadd.xlane.f32.xlu0 %v1427
        %v1429 = vpop.xlane.xlu0 %1428
        %v1430 = vsel %vm1280, %v1420, 0.0
        %1431 = vadd.xlane.f32.xlu0 %v1430
        %v1432 = vpop.xlane.xlu0 %1431
        %v1433 = vrcp.pop %v1423
        %v1434 = vrcp.pop %v1426
        %v1435 = vrcp.pop %v1429
        %v1436 = vrcp.pop %v1432
        %v1437 = vmul.f32 %v1414, %v1433
        %v1438 = vmul.f32 %v1416, %v1434
        %v1439 = vmul.f32 %v1418, %v1435
        %v1440 = vmul.f32 %v1420, %v1436
        %v1442 = vsel %vm1280, %v1437, 0
        %v1445 = vsel %vm1280, %v1232, 0
        %1447 = vmatpush.xpose.msra.mxu0 0.0
        %1448 = vmatpush.xpose.msra.mxu0 0.0
        %1449 = vmatpush.xpose.msra.mxu0 0.0
        %1450 = vmatpush.xpose.msra.mxu0 0.0
        %1451 = vmatpush.xpose.msra.mxu0 0.0
        %1452 = vmatpush.xpose.msra.mxu0 0.0
        %1453 = vmatpush.xpose.msra.mxu0 0.0
        %1454 = vmatpush.xpose.msra.mxu0 0.0
        %1455 = vmatpush.xpose.msra.mxu0 0.0
        %1456 = vmatpush.xpose.msra.mxu0 0.0
        %1457 = vmatpush.xpose.msra.mxu0 0.0
        %1458 = vmatpush.xpose.msra.mxu0 0.0
        %1459 = vmatpush.xpose.msra.mxu0 0.0
        %1460 = vmatpush.xpose.msra.mxu0 0.0
        %1461 = vmatpush.xpose.msra.mxu0 0.0
        %1462 = vmatpush.xpose.msra.mxu0 %v1445
        %1463 = vmatmul.f32.gmra.mxu0 %v1442
        %v1464 = vpop.f32.mrf.mxu0
        %v1465 = vadd.f32 0.0, %v1464
        %1466 = vdwg.mxu0
        %v1468 = vsel %vm1280, %v1438, 0
        %v1471 = vsel %vm1280, %v1233, 0
        %1473 = vmatpush.xpose.msra.mxu0 0.0
        %1474 = vmatpush.xpose.msra.mxu0 0.0
        %1475 = vmatpush.xpose.msra.mxu0 0.0
        %1476 = vmatpush.xpose.msra.mxu0 0.0
        %1477 = vmatpush.xpose.msra.mxu0 0.0
        %1478 = vmatpush.xpose.msra.mxu0 0.0
        %1479 = vmatpush.xpose.msra.mxu0 0.0
        %1480 = vmatpush.xpose.msra.mxu0 0.0
        %1481 = vmatpush.xpose.msra.mxu0 0.0
        %1482 = vmatpush.xpose.msra.mxu0 0.0
        %1483 = vmatpush.xpose.msra.mxu0 0.0
        %1484 = vmatpush.xpose.msra.mxu0 0.0
        %1485 = vmatpush.xpose.msra.mxu0 0.0
        %1486 = vmatpush.xpose.msra.mxu0 0.0
        %1487 = vmatpush.xpose.msra.mxu0 0.0
        %1488 = vmatpush.xpose.msra.mxu0 %v1471
        %1489 = vmatmul.f32.gmra.mxu0 %v1468
        %v1490 = vpop.f32.mrf.mxu0
        %v1491 = vadd.f32 0.0, %v1490
        %1492 = vdwg.mxu0
        %v1494 = vsel %vm1280, %v1439, 0
        %v1497 = vsel %vm1280, %v1264, 0
        %1499 = vmatpush.xpose.msra.mxu0 0.0
        %1500 = vmatpush.xpose.msra.mxu0 0.0
        %1501 = vmatpush.xpose.msra.mxu0 0.0
        %1502 = vmatpush.xpose.msra.mxu0 0.0
        %1503 = vmatpush.xpose.msra.mxu0 0.0
        %1504 = vmatpush.xpose.msra.mxu0 0.0
        %1505 = vmatpush.xpose.msra.mxu0 0.0
        %1506 = vmatpush.xpose.msra.mxu0 0.0
        %1507 = vmatpush.xpose.msra.mxu0 0.0
        %1508 = vmatpush.xpose.msra.mxu0 0.0
        %1509 = vmatpush.xpose.msra.mxu0 0.0
        %1510 = vmatpush.xpose.msra.mxu0 0.0
        %1511 = vmatpush.xpose.msra.mxu0 0.0
        %1512 = vmatpush.xpose.msra.mxu0 0.0
        %1513 = vmatpush.xpose.msra.mxu0 0.0
        %1514 = vmatpush.xpose.msra.mxu0 %v1497
        %1515 = vmatmul.f32.gmra.mxu0 %v1494
        %v1516 = vpop.f32.mrf.mxu0
        %v1517 = vadd.f32 0.0, %v1516
        %1518 = vdwg.mxu0
        %v1520 = vsel %vm1280, %v1440, 0
        %v1523 = vsel %vm1280, %v1265, 0
        %1525 = vmatpush.xpose.msra.mxu0 0.0
        %1526 = vmatpush.xpose.msra.mxu0 0.0
        %1527 = vmatpush.xpose.msra.mxu0 0.0
        %1528 = vmatpush.xpose.msra.mxu0 0.0
        %1529 = vmatpush.xpose.msra.mxu0 0.0
        %1530 = vmatpush.xpose.msra.mxu0 0.0
        %1531 = vmatpush.xpose.msra.mxu0 0.0
        %1532 = vmatpush.xpose.msra.mxu0 0.0
        %1533 = vmatpush.xpose.msra.mxu0 0.0
        %1534 = vmatpush.xpose.msra.mxu0 0.0
        %1535 = vmatpush.xpose.msra.mxu0 0.0
        %1536 = vmatpush.xpose.msra.mxu0 0.0
        %1537 = vmatpush.xpose.msra.mxu0 0.0
        %1538 = vmatpush.xpose.msra.mxu0 0.0
        %1539 = vmatpush.xpose.msra.mxu0 0.0
        %1540 = vmatpush.xpose.msra.mxu0 %v1523
        %1541 = vmatmul.f32.gmra.mxu0 %v1520
        %v1542 = vpop.f32.mrf.mxu0
        %v1543 = vadd.f32 0.0, %v1542
        %1544 = vdwg.mxu0
        %1545 = vxpose.xlu0.b32.start [1/16] %v1465, 128
        %1546 = vxpose.xlu0.b32.cont [2/16] 0.0, 128
        %1547 = vxpose.xlu0.b32.cont [3/16] 0.0, 128
        %1548 = vxpose.xlu0.b32.cont [4/16] 0.0, 128
        %1549 = vxpose.xlu0.b32.cont [5/16] 0.0, 128
        %1550 = vxpose.xlu0.b32.cont [6/16] 0.0, 128
        %1551 = vxpose.xlu0.b32.cont [7/16] 0.0, 128
        %1552 = vxpose.xlu0.b32.cont [8/16] 0.0, 128
        %1553 = vxpose.xlu0.b32.cont [9/16] 0.0, 128
        %1554 = vxpose.xlu0.b32.cont [10/16] 0.0, 128
        %1555 = vxpose.xlu0.b32.cont [11/16] 0.0, 128
        %1556 = vxpose.xlu0.b32.cont [12/16] 0.0, 128
        %1557 = vxpose.xlu0.b32.cont [13/16] 0.0, 128
        %1558 = vxpose.xlu0.b32.cont [14/16] 0.0, 128
        %1559 = vxpose.xlu0.b32.cont [15/16] 0.0, 128
        %1560 = vxpose.xlu0.b32.end [16/16] 0.0, 128
        %v1561 = vpop.trf.xlu0
        %v1562 = vpop.trf.xlu0
        %v1563 = vpop.trf.xlu0
        %v1564 = vpop.trf.xlu0
        %v1565 = vpop.trf.xlu0
        %v1566 = vpop.trf.xlu0
        %v1567 = vpop.trf.xlu0
        %v1568 = vpop.trf.xlu0
        %v1569 = vpop.trf.xlu0
        %v1570 = vpop.trf.xlu0
        %v1571 = vpop.trf.xlu0
        %v1572 = vpop.trf.xlu0
        %v1573 = vpop.trf.xlu0
        %v1574 = vpop.trf.xlu0
        %v1575 = vpop.trf.xlu0
        %v1576 = vpop.trf.xlu0
        %1577 = vxpose.xlu0.b32.start [1/16] %v1491, 128
        %1578 = vxpose.xlu0.b32.cont [2/16] 0.0, 128
        %1579 = vxpose.xlu0.b32.cont [3/16] 0.0, 128
        %1580 = vxpose.xlu0.b32.cont [4/16] 0.0, 128
        %1581 = vxpose.xlu0.b32.cont [5/16] 0.0, 128
        %1582 = vxpose.xlu0.b32.cont [6/16] 0.0, 128
        %1583 = vxpose.xlu0.b32.cont [7/16] 0.0, 128
        %1584 = vxpose.xlu0.b32.cont [8/16] 0.0, 128
        %1585 = vxpose.xlu0.b32.cont [9/16] 0.0, 128
        %1586 = vxpose.xlu0.b32.cont [10/16] 0.0, 128
        %1587 = vxpose.xlu0.b32.cont [11/16] 0.0, 128
        %1588 = vxpose.xlu0.b32.cont [12/16] 0.0, 128
        %1589 = vxpose.xlu0.b32.cont [13/16] 0.0, 128
        %1590 = vxpose.xlu0.b32.cont [14/16] 0.0, 128
        %1591 = vxpose.xlu0.b32.cont [15/16] 0.0, 128
        %1592 = vxpose.xlu0.b32.end [16/16] 0.0, 128
        %v1593 = vpop.trf.xlu0
        %v1594 = vpop.trf.xlu0
        %v1595 = vpop.trf.xlu0
        %v1596 = vpop.trf.xlu0
        %v1597 = vpop.trf.xlu0
        %v1598 = vpop.trf.xlu0
        %v1599 = vpop.trf.xlu0
        %v1600 = vpop.trf.xlu0
        %v1601 = vpop.trf.xlu0
        %v1602 = vpop.trf.xlu0
        %v1603 = vpop.trf.xlu0
        %v1604 = vpop.trf.xlu0
        %v1605 = vpop.trf.xlu0
        %v1606 = vpop.trf.xlu0
        %v1607 = vpop.trf.xlu0
        %v1608 = vpop.trf.xlu0
        %1609 = vxpose.xlu0.b32.start [1/16] %v1517, 128
        %1610 = vxpose.xlu0.b32.cont [2/16] 0.0, 128
        %1611 = vxpose.xlu0.b32.cont [3/16] 0.0, 128
        %1612 = vxpose.xlu0.b32.cont [4/16] 0.0, 128
        %1613 = vxpose.xlu0.b32.cont [5/16] 0.0, 128
        %1614 = vxpose.xlu0.b32.cont [6/16] 0.0, 128
        %1615 = vxpose.xlu0.b32.cont [7/16] 0.0, 128
        %1616 = vxpose.xlu0.b32.cont [8/16] 0.0, 128
        %1617 = vxpose.xlu0.b32.cont [9/16] 0.0, 128
        %1618 = vxpose.xlu0.b32.cont [10/16] 0.0, 128
        %1619 = vxpose.xlu0.b32.cont [11/16] 0.0, 128
        %1620 = vxpose.xlu0.b32.cont [12/16] 0.0, 128
        %1621 = vxpose.xlu0.b32.cont [13/16] 0.0, 128
        %1622 = vxpose.xlu0.b32.cont [14/16] 0.0, 128
        %1623 = vxpose.xlu0.b32.cont [15/16] 0.0, 128
        %1624 = vxpose.xlu0.b32.end [16/16] 0.0, 128
        %v1625 = vpop.trf.xlu0
        %v1626 = vpop.trf.xlu0
        %v1627 = vpop.trf.xlu0
        %v1628 = vpop.trf.xlu0
        %v1629 = vpop.trf.xlu0
        %v1630 = vpop.trf.xlu0
        %v1631 = vpop.trf.xlu0
        %v1632 = vpop.trf.xlu0
        %v1633 = vpop.trf.xlu0
        %v1634 = vpop.trf.xlu0
        %v1635 = vpop.trf.xlu0
        %v1636 = vpop.trf.xlu0
        %v1637 = vpop.trf.xlu0
        %v1638 = vpop.trf.xlu0
        %v1639 = vpop.trf.xlu0
        %v1640 = vpop.trf.xlu0
        %1641 = vxpose.xlu0.b32.start [1/16] %v1543, 128
        %1642 = vxpose.xlu0.b32.cont [2/16] 0.0, 128
        %1643 = vxpose.xlu0.b32.cont [3/16] 0.0, 128
        %1644 = vxpose.xlu0.b32.cont [4/16] 0.0, 128
        %1645 = vxpose.xlu0.b32.cont [5/16] 0.0, 128
        %1646 = vxpose.xlu0.b32.cont [6/16] 0.0, 128
        %1647 = vxpose.xlu0.b32.cont [7/16] 0.0, 128
        %1648 = vxpose.xlu0.b32.cont [8/16] 0.0, 128
        %1649 = vxpose.xlu0.b32.cont [9/16] 0.0, 128
        %1650 = vxpose.xlu0.b32.cont [10/16] 0.0, 128
        %1651 = vxpose.xlu0.b32.cont [11/16] 0.0, 128
        %1652 = vxpose.xlu0.b32.cont [12/16] 0.0, 128
        %1653 = vxpose.xlu0.b32.cont [13/16] 0.0, 128
        %1654 = vxpose.xlu0.b32.cont [14/16] 0.0, 128
        %1655 = vxpose.xlu0.b32.cont [15/16] 0.0, 128
        %1656 = vxpose.xlu0.b32.end [16/16] 0.0, 128
        %v1657 = vpop.trf.xlu0
        %v1658 = vpop.trf.xlu0
        %v1659 = vpop.trf.xlu0
        %v1660 = vpop.trf.xlu0
        %v1661 = vpop.trf.xlu0
        %v1662 = vpop.trf.xlu0
        %v1663 = vpop.trf.xlu0
        %v1664 = vpop.trf.xlu0
        %v1665 = vpop.trf.xlu0
        %v1666 = vpop.trf.xlu0
        %v1667 = vpop.trf.xlu0
        %v1668 = vpop.trf.xlu0
        %v1669 = vpop.trf.xlu0
        %v1670 = vpop.trf.xlu0
        %v1671 = vpop.trf.xlu0
        %v1672 = vpop.trf.xlu0
        %1673 = vxpose.xlu0.b32.start [1/16] %v1561, 128
        %1674 = vxpose.xlu0.b32.cont [2/16] %v1593, 128
        %1675 = vxpose.xlu0.b32.cont [3/16] 0.0, 128
        %1676 = vxpose.xlu0.b32.cont [4/16] 0.0, 128
        %1677 = vxpose.xlu0.b32.cont [5/16] 0.0, 128
        %1678 = vxpose.xlu0.b32.cont [6/16] 0.0, 128
        %1679 = vxpose.xlu0.b32.cont [7/16] 0.0, 128
        %1680 = vxpose.xlu0.b32.cont [8/16] 0.0, 128
        %1681 = vxpose.xlu0.b32.cont [9/16] 0.0, 128
        %1682 = vxpose.xlu0.b32.cont [10/16] 0.0, 128
        %1683 = vxpose.xlu0.b32.cont [11/16] 0.0, 128
        %1684 = vxpose.xlu0.b32.cont [12/16] 0.0, 128
        %1685 = vxpose.xlu0.b32.cont [13/16] 0.0, 128
        %1686 = vxpose.xlu0.b32.cont [14/16] 0.0, 128
        %1687 = vxpose.xlu0.b32.cont [15/16] 0.0, 128
        %1688 = vxpose.xlu0.b32.end [16/16] 0.0, 128
        %v1689 = vpop.trf.xlu0
        %v1690 = vpop.trf.xlu0
        %v1691 = vpop.trf.xlu0
        %v1692 = vpop.trf.xlu0
        %v1693 = vpop.trf.xlu0
        %v1694 = vpop.trf.xlu0
        %v1695 = vpop.trf.xlu0
        %v1696 = vpop.trf.xlu0
        %v1697 = vpop.trf.xlu0
        %v1698 = vpop.trf.xlu0
        %v1699 = vpop.trf.xlu0
        %v1700 = vpop.trf.xlu0
        %v1701 = vpop.trf.xlu0
        %v1702 = vpop.trf.xlu0
        %v1703 = vpop.trf.xlu0
        %v1704 = vpop.trf.xlu0
        %1705 = vxpose.xlu0.b32.start [1/16] %v1625, 128
        %1706 = vxpose.xlu0.b32.cont [2/16] %v1657, 128
        %1707 = vxpose.xlu0.b32.cont [3/16] 0.0, 128
        %1708 = vxpose.xlu0.b32.cont [4/16] 0.0, 128
        %1709 = vxpose.xlu0.b32.cont [5/16] 0.0, 128
        %1710 = vxpose.xlu0.b32.cont [6/16] 0.0, 128
        %1711 = vxpose.xlu0.b32.cont [7/16] 0.0, 128
        %1712 = vxpose.xlu0.b32.cont [8/16] 0.0, 128
        %1713 = vxpose.xlu0.b32.cont [9/16] 0.0, 128
        %1714 = vxpose.xlu0.b32.cont [10/16] 0.0, 128
        %1715 = vxpose.xlu0.b32.cont [11/16] 0.0, 128
        %1716 = vxpose.xlu0.b32.cont [12/16] 0.0, 128
        %1717 = vxpose.xlu0.b32.cont [13/16] 0.0, 128
        %1718 = vxpose.xlu0.b32.cont [14/16] 0.0, 128
        %1719 = vxpose.xlu0.b32.cont [15/16] 0.0, 128
        %1720 = vxpose.xlu0.b32.end [16/16] 0.0, 128
        %v1721 = vpop.trf.xlu0
        %v1722 = vpop.trf.xlu0
        %v1723 = vpop.trf.xlu0
        %v1724 = vpop.trf.xlu0
        %v1725 = vpop.trf.xlu0
        %v1726 = vpop.trf.xlu0
        %v1727 = vpop.trf.xlu0
        %v1728 = vpop.trf.xlu0
        %v1729 = vpop.trf.xlu0
        %v1730 = vpop.trf.xlu0
        %v1731 = vpop.trf.xlu0
        %v1732 = vpop.trf.xlu0
        %v1733 = vpop.trf.xlu0
        %v1734 = vpop.trf.xlu0
        %v1735 = vpop.trf.xlu0
        %v1736 = vpop.trf.xlu0
        %v1737 = vpack.c.bf16 %v1721, %v1689
        %v1738 = vld [vmem:[%s655] sm:$0xf]
        %v1739 = vld [vmem:[%s655 + $0x4] sm:$0xf]
        %v1740 = vld [vmem:[%s658] sm:$0x1]
        %v1742 = vperm.slane %v1740, 0
        %v1746 = vunpack.c.l.b16 %v1738
        %v1747 = vunpack.c.l.b16 %v1739
        %v1748 = vpack.c.b16 %v1747, %v1746
        %v1751 = vsel %vm928, %v1737, 0
        %1753 = vmatpush.bf16.msra.mxu0 0
        %1754 = vmatpush.bf16.msra.mxu0 0
        %1755 = vmatpush.bf16.msra.mxu0 0
        %1756 = vmatpush.bf16.msra.mxu0 0
        %1757 = vmatpush.bf16.msra.mxu0 0
        %1758 = vmatpush.bf16.msra.mxu0 0
        %1759 = vmatpush.bf16.msra.mxu0 0
        %1760 = vmatpush.bf16.msra.mxu0 %v1748
        %1761 = vmatmul.bf16.gmra.mxu0 %v1751
        %v1762 = vpop.f32.mrf.mxu0
        %v1763 = vadd.f32 %v1742, %v1762
        %v1764 = vpop.f32.mrf.mxu0
        %v1765 = vadd.f32 %v1742, %v1764
        %1766 = vdwg.mxu0
        %v1767 = vadd.f32 %v913, %v1763
        %v1768 = vadd.f32 %v914, %v1765
        %v1769 = vld [vmem:[%s544] sm:$0x1]
        %v1770 = vld [vmem:[%s661] sm:$0x1]
        %v1771 = vsel %vm928, %v1767, 0.0
        %1772 = vadd.xlane.f32.xlu0 %v1771
        %v1773 = vpop.xlane.xlu0 %1772
        %v1774 = vsel %vm928, %v1768, 0.0
        %1775 = vadd.xlane.f32.xlu0 %v1774
        %v1776 = vpop.xlane.xlu0 %1775
        %v1777 = vrcp.pop 16.0
        %v1778 = vmul.f32 16.0, %v1777
        %v1779 = vsub.f32 1.0, %v1778
        %v1780 = vmul.f32 %v1777, %v1779
        %v1781 = vadd.f32 %v1777, %v1780
        %vm1782 = vweird.f32 %v1777
        %v1783 = vsel %vm1782, %v1777, %v1781
        %v1784 = vmul.f32 %v1773, %v1783
        %v1785 = vmul.f32 %v1776, %v1783
        %v1786 = vsub.f32 %v1767, %v1784
        %v1787 = vsub.f32 %v1768, %v1785
        %v1788 = vmul.f32 %v1786, %v1786
        %v1789 = vmul.f32 %v1787, %v1787
        %v1790 = vsel %vm928, %v1788, 0.0
        %1791 = vadd.xlane.f32.xlu0 %v1790
        %v1792 = vpop.xlane.xlu0 %1791
        %v1793 = vsel %vm928, %v1789, 0.0
        %1794 = vadd.xlane.f32.xlu0 %v1793
        %v1795 = vpop.xlane.xlu0 %1794
        %v1796 = vmul.f32 %v1792, %v1783
        %v1797 = vmul.f32 %v1795, %v1783
        %v1798 = vadd.f32 %v1796, 1e-05
        %v1799 = vadd.f32 %v1797, 1e-05
        %v1800 = vrsqrt.pop %v1798
        %v1801 = vmul.f32 %v1800, %v1798
        %v1802 = vmul.f32 %v1801, %v1800
        %v1803 = vmul.f32 0.5, %v1802
        %v1804 = vsub.f32 1.5, %v1803
        %v1805 = vmul.f32 %v1800, %v1804
        %vm1806 = vweird.f32 %v1798
        %vm1807 = vweird.f32 %v1800
        %vm1808 = vmor %vm1806, %vm1807
        %v1809 = vsel %vm1808, %v1800, %v1805
        %v1810 = vrsqrt.pop %v1799
        %v1811 = vmul.f32 %v1810, %v1799
        %v1812 = vmul.f32 %v1811, %v1810
        %v1813 = vmul.f32 0.5, %v1812
        %v1814 = vsub.f32 1.5, %v1813
        %v1815 = vmul.f32 %v1810, %v1814
        %vm1816 = vweird.f32 %v1799
        %vm1817 = vweird.f32 %v1810
        %vm1818 = vmor %vm1816, %vm1817
        %v1819 = vsel %vm1818, %v1810, %v1815
        %v1820 = vmul.f32 %v1786, %v1809
        %v1821 = vmul.f32 %v1787, %v1819
        %v1823 = vperm.slane %v1769, 0
        %v1825 = vmul.f32 %v1820, %v1823
        %v1826 = vmul.f32 %v1821, %v1823
        %v1828 = vperm.slane %v1770, 0
        %v1830 = vadd.f32 %v1825, %v1828
        %v1831 = vadd.f32 %v1826, %v1828
        %v1832 = vpack.c.bf16 %v1831, %v1830
        %v1833 = vld [vmem:[%s554] sm:$0xf]
        %v1834 = vld [vmem:[%s554 + $0x4] sm:$0xf]
        %v1835 = vld [vmem:[%s664] sm:$0x1]
        %v1837 = vperm.slane %v1835, 0
        %v1841 = vunpack.c.l.b16 %v1833
        %v1842 = vunpack.c.l.b16 %v1834
        %v1843 = vpack.c.b16 %v1842, %v1841
        %v1846 = vsel %vm928, %v1832, 0
        %1848 = vmatpush.bf16.msra.mxu0 0
        %1849 = vmatpush.bf16.msra.mxu0 0
        %1850 = vmatpush.bf16.msra.mxu0 0
        %1851 = vmatpush.bf16.msra.mxu0 0
        %1852 = vmatpush.bf16.msra.mxu0 0
        %1853 = vmatpush.bf16.msra.mxu0 0
        %1854 = vmatpush.bf16.msra.mxu0 0
        %1855 = vmatpush.bf16.msra.mxu0 %v1843
        %1856 = vmatmul.bf16.gmra.mxu0 %v1846
        %v1857 = vpop.f32.mrf.mxu0
        %v1858 = vadd.f32 %v1837, %v1857
        %v1859 = vpop.f32.mrf.mxu0
        %v1860 = vadd.f32 %v1837, %v1859
        %1861 = vdwg.mxu0
        %v1862 = vmax.f32 %v1858, 0.0
        %v1863 = vmax.f32 %v1860, 0.0
        %v1864 = vpack.c.bf16 %v1863, %v1862
        %v1865 = vld [vmem:[%s669] sm:$0xf]
        %v1866 = vld [vmem:[%s669 + $0x4] sm:$0xf]
        %v1867 = vld [vmem:[%s669 + $0x8] sm:$0xf]
        %v1868 = vld [vmem:[%s669 + $0xc] sm:$0xf]
        %v1869 = vld [vmem:[%s672] sm:$0x1]
        %v1871 = vperm.slane %v1869, 0
        %v1877 = vunpack.c.l.b16 %v1865
        %v1878 = vunpack.c.l.b16 %v1866
        %v1879 = vunpack.c.l.b16 %v1867
        %v1880 = vunpack.c.l.b16 %v1868
        %v1881 = vpack.c.b16 %v1878, %v1877
        %v1882 = vpack.c.b16 %v1880, %v1879
        %vm1885 = vcmask 261120
        %v1887 = vsel %vm1885, %v1864, 0
        %1889 = vmatpush.bf16.msra.mxu0 0
        %1890 = vmatpush.bf16.msra.mxu0 0
        %1891 = vmatpush.bf16.msra.mxu0 0
        %1892 = vmatpush.bf16.msra.mxu0 0
        %1893 = vmatpush.bf16.msra.mxu0 0
        %1894 = vmatpush.bf16.msra.mxu0 0
        %1895 = vmatpush.bf16.msra.mxu0 %v1882
        %1896 = vmatpush.bf16.msra.mxu0 %v1881
        %1897 = vmatmul.bf16.gmra.mxu0 %v1887
        %v1898 = vpop.f32.mrf.mxu0
        %v1899 = vadd.f32 %v1871, %v1898
        %v1900 = vpop.f32.mrf.mxu0
        %v1901 = vadd.f32 %v1871, %v1900
        %1902 = vdwg.mxu0
        %v1903 = vadd.f32 %v1830, %v1899
        %v1904 = vadd.f32 %v1831, %v1901
        %v1905 = vld [vmem:[%s563] sm:$0x1]
        %v1906 = vld [vmem:[%s675] sm:$0x1]
        %v1907 = vsel %vm928, %v1903, 0.0
        %1908 = vadd.xlane.f32.xlu0 %v1907
        %v1909 = vpop.xlane.xlu0 %1908
        %v1910 = vsel %vm928, %v1904, 0.0
        %1911 = vadd.xlane.f32.xlu0 %v1910
        %v1912 = vpop.xlane.xlu0 %1911
        %v1913 = vmul.f32 %v1909, %v1783
        %v1914 = vmul.f32 %v1912, %v1783
        %v1915 = vsub.f32 %v1903, %v1913
        %v1916 = vsub.f32 %v1904, %v1914
        %v1917 = vmul.f32 %v1915, %v1915
        %v1918 = vmul.f32 %v1916, %v1916
        %v1919 = vsel %vm928, %v1917, 0.0
        %1920 = vadd.xlane.f32.xlu0 %v1919
        %v1921 = vpop.xlane.xlu0 %1920
        %v1922 = vsel %vm928, %v1918, 0.0
        %1923 = vadd.xlane.f32.xlu0 %v1922
        %v1924 = vpop.xlane.xlu0 %1923
        %v1925 = vmul.f32 %v1921, %v1783
        %v1926 = vmul.f32 %v1924, %v1783
        %v1927 = vadd.f32 %v1925, 1e-05
        %v1928 = vadd.f32 %v1926, 1e-05
        %v1929 = vrsqrt.pop %v1927
        %v1930 = vmul.f32 %v1929, %v1927
        %v1931 = vmul.f32 %v1930, %v1929
        %v1932 = vmul.f32 0.5, %v1931
        %v1933 = vsub.f32 1.5, %v1932
        %v1934 = vmul.f32 %v1929, %v1933
        %vm1935 = vweird.f32 %v1927
        %vm1936 = vweird.f32 %v1929
        %vm1937 = vmor %vm1935, %vm1936
        %v1938 = vsel %vm1937, %v1929, %v1934
        %v1939 = vrsqrt.pop %v1928
        %v1940 = vmul.f32 %v1939, %v1928
        %v1941 = vmul.f32 %v1940, %v1939
        %v1942 = vmul.f32 0.5, %v1941
        %v1943 = vsub.f32 1.5, %v1942
        %v1944 = vmul.f32 %v1939, %v1943
        %vm1945 = vweird.f32 %v1928
        %vm1946 = vweird.f32 %v1939
        %vm1947 = vmor %vm1945, %vm1946
        %v1948 = vsel %vm1947, %v1939, %v1944
        %v1949 = vmul.f32 %v1915, %v1938
        %v1950 = vmul.f32 %v1916, %v1948
        %v1952 = vperm.slane %v1905, 0
        %v1954 = vmul.f32 %v1949, %v1952
        %v1955 = vmul.f32 %v1950, %v1952
        %v1957 = vperm.slane %v1906, 0
        %v1959 = vadd.f32 %v1954, %v1957
        %v1960 = vadd.f32 %v1955, %v1957
        %1961 = vst.msk [vmem:[#allocation2] sm:$0xff] %vm928, %v1959
        %1962 = vst.msk [vmem:[#allocation2 + $0x8] sm:$0xff] %vm928, %v1960
        %p1963 = scmp.eq.s32.totalorder %s33, 1
        // Predicated region
        $region112: #{tpu_custom_call.1} parent=71 // pred_check
          %p1964 = pneg %p1963
        $region113: #{tpu_custom_call.1} parent=71 // pred_check_branch
          %1966 = sbr.rel (%p1964) target = $region115
        $region114: #{tpu_custom_call.1} parent=71 // pred_region
          %v1967 = vld [vmem:[#allocation3] sm:$0xff]
          %v1968 = vld [vmem:[#allocation3 + $0x8] sm:$0xff]
          %vm1969 = vcmp.gt.f32.partialorder %v1967, 0.5
          %vm1970 = vcmp.gt.f32.partialorder %v1968, 0.5
          %v1971 = vsel %vm1969, 1, 0
          %v1972 = vsel %vm1970, 1, 0
          %1973 = vset.pattern.permute.xlu0 0
          %1974 = vperm.xlu0 %1973, %v1971
          %v1975 = vpop.permute.xlu0 %1974
          %1976 = vset.pattern.permute.xlu0 0
          %1977 = vperm.xlu0 %1976, %v1972
          %v1978 = vpop.permute.xlu0 %1977
          %vm1979 = vcmp.eq.s32.totalorder %v1975, 1
          %vm1980 = vcmp.eq.s32.totalorder %v1978, 1
          %v1981 = vsel %vm1979, 0.0, %v1959
          %v1982 = vsel %vm1980, 0.0, %v1960
          %v1983 = vmul.f32 %v1981, %v1981
          %v1984 = vmul.f32 %v1982, %v1982
          %v1985 = vsel %vm928, %v1983, 0.0
          %v1986 = vrot.slane %v1985, 4
          %v1987 = vadd.f32 %v1985, %v1986
          %v1988 = vrot.slane %v1987, 2
          %v1989 = vadd.f32 %v1987, %v1988
          %v1990 = vrot.slane %v1989, 1
          %v1991 = vadd.f32 %v1989, %v1990
          %v1992 = vsel %vm928, %v1984, 0.0
          %v1993 = vrot.slane %v1992, 4
          %v1994 = vadd.f32 %v1992, %v1993
          %v1995 = vrot.slane %v1994, 2
          %v1996 = vadd.f32 %v1994, %v1995
          %v1997 = vrot.slane %v1996, 1
          %v1998 = vadd.f32 %v1996, %v1997
          %v1999 = vrsqrt.pop %v1991
          %v2000 = vmul.f32 %v1999, %v1991
          %v2001 = vmul.f32 %v2000, %v1999
          %v2002 = vmul.f32 0.5, %v2001
          %v2003 = vsub.f32 1.5, %v2002
          %v2004 = vmul.f32 %v1999, %v2003
          %v2005 = vmul.f32 %v1991, %v2004
          %vm2006 = vcmp.eq.f32.partialorder %v1991, inf
          %v2007 = vsel %vm2006, %v1991, %v2005
          %vm2008 = vcmp.eq.f32.partialorder %v1991, 0.0
          %v2009 = vand.u32 %v1991, 2147483648
          %v2010 = vsel %vm2008, %v2009, %v2007
          %v2011 = vrsqrt.pop %v1998
          %v2012 = vmul.f32 %v2011, %v1998
          %v2013 = vmul.f32 %v2012, %v2011
          %v2014 = vmul.f32 0.5, %v2013
          %v2015 = vsub.f32 1.5, %v2014
          %v2016 = vmul.f32 %v2011, %v2015
          %v2017 = vmul.f32 %v1998, %v2016
          %vm2018 = vcmp.eq.f32.partialorder %v1998, inf
          %v2019 = vsel %vm2018, %v1998, %v2017
          %vm2020 = vcmp.eq.f32.partialorder %v1998, 0.0
          %v2021 = vand.u32 %v1998, 2147483648
          %v2022 = vsel %vm2020, %v2021, %v2019
          %v2023 = vmax.f32 %v2010, 1e-12
          %v2024 = vmax.f32 %v2022, 1e-12
          %v2025 = vrcp.pop %v2023
          %v2026 = vrcp.pop %v2024
          %v2027 = vmul.f32 %v1981, %v2025
          %v2028 = vmul.f32 %v1982, %v2026
          %2029 = vxpose.xlu0.b32.start [1/16] %v2027, 128
          %2030 = vxpose.xlu0.b32.cont [2/16] 0.0, 128
          %2031 = vxpose.xlu0.b32.cont [3/16] 0.0, 128
          %2032 = vxpose.xlu0.b32.cont [4/16] 0.0, 128
          %2033 = vxpose.xlu0.b32.cont [5/16] 0.0, 128
          %2034 = vxpose.xlu0.b32.cont [6/16] 0.0, 128
          %2035 = vxpose.xlu0.b32.cont [7/16] 0.0, 128
          %2036 = vxpose.xlu0.b32.cont [8/16] 0.0, 128
          %2037 = vxpose.xlu0.b32.cont [9/16] 0.0, 128
          %2038 = vxpose.xlu0.b32.cont [10/16] 0.0, 128
          %2039 = vxpose.xlu0.b32.cont [11/16] 0.0, 128
          %2040 = vxpose.xlu0.b32.cont [12/16] 0.0, 128
          %2041 = vxpose.xlu0.b32.cont [13/16] 0.0, 128
          %2042 = vxpose.xlu0.b32.cont [14/16] 0.0, 128
          %2043 = vxpose.xlu0.b32.cont [15/16] 0.0, 128
          %2044 = vxpose.xlu0.b32.end [16/16] 0.0, 128
          %v2045 = vpop.trf.xlu0
          %v2046 = vpop.trf.xlu0
          %v2047 = vpop.trf.xlu0
          %v2048 = vpop.trf.xlu0
          %v2049 = vpop.trf.xlu0
          %v2050 = vpop.trf.xlu0
          %v2051 = vpop.trf.xlu0
          %v2052 = vpop.trf.xlu0
          %v2053 = vpop.trf.xlu0
          %v2054 = vpop.trf.xlu0
          %v2055 = vpop.trf.xlu0
          %v2056 = vpop.trf.xlu0
          %v2057 = vpop.trf.xlu0
          %v2058 = vpop.trf.xlu0
          %v2059 = vpop.trf.xlu0
          %v2060 = vpop.trf.xlu0
          %v2062 = vsel %vm1280, %v2045, 0
          %v2065 = vsel %vm1280, %v2046, 0
          %2067 = vmatpush.msra.mxu0 0.0
          %2068 = vmatpush.msra.mxu0 0.0
          %2069 = vmatpush.msra.mxu0 0.0
          %2070 = vmatpush.msra.mxu0 0.0
          %2071 = vmatpush.msra.mxu0 0.0
          %2072 = vmatpush.msra.mxu0 0.0
          %2073 = vmatpush.msra.mxu0 0.0
          %2074 = vmatpush.msra.mxu0 0.0
          %2075 = vmatpush.msra.mxu0 0.0
          %2076 = vmatpush.msra.mxu0 0.0
          %2077 = vmatpush.msra.mxu0 0.0
          %2078 = vmatpush.msra.mxu0 0.0
          %2079 = vmatpush.msra.mxu0 0.0
          %2080 = vmatpush.msra.mxu0 0.0
          %2081 = vmatpush.msra.mxu0 0.0
          %2082 = vmatpush.msra.mxu0 %v2027
          %2083 = vmatmul.f32.gmra.mxu0 %v2062
          %v2084 = vpop.f32.mrf.mxu0
          %v2085 = vadd.f32 0.0, %v2084
          %2086 = vmatmul.f32.gmra.mxu0 %v2065
          %v2087 = vpop.f32.mrf.mxu0
          %v2088 = vadd.f32 0.0, %v2087
          %2089 = vdwg.mxu0
          %2090 = vxpose.xlu0.b32.start [1/16] %v2028, 128
          %2091 = vxpose.xlu0.b32.cont [2/16] 0.0, 128
          %2092 = vxpose.xlu0.b32.cont [3/16] 0.0, 128
          %2093 = vxpose.xlu0.b32.cont [4/16] 0.0, 128
          %2094 = vxpose.xlu0.b32.cont [5/16] 0.0, 128
          %2095 = vxpose.xlu0.b32.cont [6/16] 0.0, 128
          %2096 = vxpose.xlu0.b32.cont [7/16] 0.0, 128
          %2097 = vxpose.xlu0.b32.cont [8/16] 0.0, 128
          %2098 = vxpose.xlu0.b32.cont [9/16] 0.0, 128
          %2099 = vxpose.xlu0.b32.cont [10/16] 0.0, 128
          %2100 = vxpose.xlu0.b32.cont [11/16] 0.0, 128
          %2101 = vxpose.xlu0.b32.cont [12/16] 0.0, 128
          %2102 = vxpose.xlu0.b32.cont [13/16] 0.0, 128
          %2103 = vxpose.xlu0.b32.cont [14/16] 0.0, 128
          %2104 = vxpose.xlu0.b32.cont [15/16] 0.0, 128
          %2105 = vxpose.xlu0.b32.end [16/16] 0.0, 128
          %v2106 = vpop.trf.xlu0
          %v2107 = vpop.trf.xlu0
          %v2108 = vpop.trf.xlu0
          %v2109 = vpop.trf.xlu0
          %v2110 = vpop.trf.xlu0
          %v2111 = vpop.trf.xlu0
          %v2112 = vpop.trf.xlu0
          %v2113 = vpop.trf.xlu0
          %v2114 = vpop.trf.xlu0
          %v2115 = vpop.trf.xlu0
          %v2116 = vpop.trf.xlu0
          %v2117 = vpop.trf.xlu0
          %v2118 = vpop.trf.xlu0
          %v2119 = vpop.trf.xlu0
          %v2120 = vpop.trf.xlu0
          %v2121 = vpop.trf.xlu0
          %v2123 = vsel %vm1280, %v2106, 0
          %v2126 = vsel %vm1280, %v2107, 0
          %2128 = vmatpush.msra.mxu0 0.0
          %2129 = vmatpush.msra.mxu0 0.0
          %2130 = vmatpush.msra.mxu0 0.0
          %2131 = vmatpush.msra.mxu0 0.0
          %2132 = vmatpush.msra.mxu0 0.0
          %2133 = vmatpush.msra.mxu0 0.0
          %2134 = vmatpush.msra.mxu0 0.0
          %2135 = vmatpush.msra.mxu0 0.0
          %2136 = vmatpush.msra.mxu0 0.0
          %2137 = vmatpush.msra.mxu0 0.0
          %2138 = vmatpush.msra.mxu0 0.0
          %2139 = vmatpush.msra.mxu0 0.0
          %2140 = vmatpush.msra.mxu0 0.0
          %2141 = vmatpush.msra.mxu0 0.0
          %2142 = vmatpush.msra.mxu0 0.0
          %2143 = vmatpush.msra.mxu0 %v2028
          %2144 = vmatmul.f32.gmra.mxu0 %v2123
          %v2145 = vpop.f32.mrf.mxu0
          %v2146 = vadd.f32 0.0, %v2145
          %2147 = vmatmul.f32.gmra.mxu0 %v2126
          %v2148 = vpop.f32.mrf.mxu0
          %v2149 = vadd.f32 0.0, %v2148
          %2150 = vdwg.mxu0
          %v2151 = vrot.slane %v2085, 4
          %vm2152 = vcmask 1047556
          %v2153 = vsel %vm2152, 0.0, %v2151
          %v2155 = vunpack.c.l.s4 1983009808
          %v2156 = vunpack.c.0.s8 %v2155
          %v2157 = vperm.slane %v2085, %v2156
          %v2159 = vunpack.c.l.s4 1983009808
          %v2160 = vunpack.c.0.s8 %v2159
          %v2161 = vperm.slane %v2153, %v2160
          %v2162 = vrot.slane %v2146, 4
          %v2163 = vsel %vm2152, 0.0, %v2162
          %v2165 = vunpack.c.l.s4 1983009808
          %v2166 = vunpack.c.0.s8 %v2165
          %v2167 = vperm.slane %v2146, %v2166
          %v2169 = vunpack.c.l.s4 1983009808
          %v2170 = vunpack.c.0.s8 %v2169
          %v2171 = vperm.slane %v2163, %v2170
          %v2172 = vrot.slane %v2167, 4
          %v2173 = vsel %vm2152, %v2172, %v2157
          %v2174 = vrot.slane %v2157, 4
          %v2175 = vsel %vm2152, %v2167, %v2174
          %v2177 = vunpack.c.l.s4 1934713408
          %v2178 = vunpack.c.0.s8 %v2177
          %v2179 = vperm.slane %v2173, %v2178
          %v2181 = vunpack.c.l.s4 1934713408
          %v2182 = vunpack.c.0.s8 %v2181
          %v2183 = vperm.slane %v2175, %v2182
          %v2184 = vrot.slane %v2171, 4
          %v2185 = vsel %vm2152, %v2184, %v2161
          %v2186 = vrot.slane %v2161, 4
          %v2187 = vsel %vm2152, %v2171, %v2186
          %v2189 = vunpack.c.l.s4 1934713408
          %v2190 = vunpack.c.0.s8 %v2189
          %v2191 = vperm.slane %v2185, %v2190
          %v2193 = vunpack.c.l.s4 1934713408
          %v2194 = vunpack.c.0.s8 %v2193
          %v2195 = vperm.slane %v2187, %v2194
          %v2196 = vrot.slane %v2179, 4
          %v2197 = vsel %vm2152, 0.0, %v2196
          %v2198 = vrot.slane %v2183, 4
          %v2199 = vsel %vm2152, 0.0, %v2198
          %v2200 = vrot.slane %v2191, 4
          %v2201 = vsel %vm2152, 0.0, %v2200
          %v2202 = vrot.slane %v2195, 4
          %v2203 = vsel %vm2152, 0.0, %v2202
          %v2204 = vrot.slane %v2088, 4
          %v2205 = vsel %vm2152, 0.0, %v2204
          %v2207 = vunpack.c.l.s4 1983009808
          %v2208 = vunpack.c.0.s8 %v2207
          %v2209 = vperm.slane %v2088, %v2208
          %v2211 = vunpack.c.l.s4 1983009808
          %v2212 = vunpack.c.0.s8 %v2211
          %v2213 = vperm.slane %v2205, %v2212
          %v2214 = vrot.slane %v2149, 4
          %v2215 = vsel %vm2152, 0.0, %v2214
          %v2217 = vunpack.c.l.s4 1983009808
          %v2218 = vunpack.c.0.s8 %v2217
          %v2219 = vperm.slane %v2149, %v2218
          %v2221 = vunpack.c.l.s4 1983009808
          %v2222 = vunpack.c.0.s8 %v2221
          %v2223 = vperm.slane %v2215, %v2222
          %v2224 = vrot.slane %v2219, 4
          %v2225 = vsel %vm2152, %v2224, %v2209
          %v2226 = vrot.slane %v2209, 4
          %v2227 = vsel %vm2152, %v2219, %v2226
          %v2229 = vunpack.c.l.s4 1934713408
          %v2230 = vunpack.c.0.s8 %v2229
          %v2231 = vperm.slane %v2225, %v2230
          %v2233 = vunpack.c.l.s4 1934713408
          %v2234 = vunpack.c.0.s8 %v2233
          %v2235 = vperm.slane %v2227, %v2234
          %v2236 = vrot.slane %v2223, 4
          %v2237 = vsel %vm2152, %v2236, %v2213
          %v2238 = vrot.slane %v2213, 4
          %v2239 = vsel %vm2152, %v2223, %v2238
          %v2241 = vunpack.c.l.s4 1934713408
          %v2242 = vunpack.c.0.s8 %v2241
          %v2243 = vperm.slane %v2237, %v2242
          %v2245 = vunpack.c.l.s4 1934713408
          %v2246 = vunpack.c.0.s8 %v2245
          %v2247 = vperm.slane %v2239, %v2246
          %v2248 = vrot.slane %v2231, 4
          %v2249 = vsel %vm2152, 0.0, %v2248
          %v2250 = vrot.slane %v2235, 4
          %v2251 = vsel %vm2152, 0.0, %v2250
          %v2252 = vrot.slane %v2243, 4
          %v2253 = vsel %vm2152, 0.0, %v2252
          %v2254 = vrot.slane %v2247, 4
          %v2255 = vsel %vm2152, 0.0, %v2254
          %2257 = vrot.lane.b32.xlu0 %v2197, 16
          %v2258 = vpop.permute.xlu0 %2257
          %2261 = vrot.lane.b32.xlu0 %v2183, 32
          %v2262 = vpop.permute.xlu0 %2261
          %2265 = vrot.lane.b32.xlu0 %v2199, 48
          %v2266 = vpop.permute.xlu0 %2265
          %2269 = vrot.lane.b32.xlu0 %v2191, 64
          %v2270 = vpop.permute.xlu0 %2269
          %2273 = vrot.lane.b32.xlu0 %v2201, 80
          %v2274 = vpop.permute.xlu0 %2273
          %2277 = vrot.lane.b32.xlu0 %v2195, 96
          %v2278 = vpop.permute.xlu0 %2277
          %2281 = vrot.lane.b32.xlu0 %v2203, 112
          %v2282 = vpop.permute.xlu0 %2281
          %2285 = vrot.lane.b32.xlu0 %v2249, 16
          %v2286 = vpop.permute.xlu0 %2285
          %2289 = vrot.lane.b32.xlu0 %v2235, 32
          %v2290 = vpop.permute.xlu0 %2289
          %2293 = vrot.lane.b32.xlu0 %v2251, 48
          %v2294 = vpop.permute.xlu0 %2293
          %2297 = vrot.lane.b32.xlu0 %v2243, 64
          %v2298 = vpop.permute.xlu0 %2297
          %2301 = vrot.lane.b32.xlu0 %v2253, 80
          %v2302 = vpop.permute.xlu0 %2301
          %2305 = vrot.lane.b32.xlu0 %v2247, 96
          %v2306 = vpop.permute.xlu0 %2305
          %2309 = vrot.lane.b32.xlu0 %v2255, 112
          %v2310 = vpop.permute.xlu0 %2309
          %v2312 = vsel %vm928, %v2179, %v2258
          %v2313 = vsel %vm1885, %v2312, %v2262
          %vm2314 = vcmask 392192
          %v2315 = vsel %vm2314, %v2313, %v2266
          %vm2316 = vcmask 523264
          %v2317 = vsel %vm2316, %v2315, %v2270
          %vm2318 = vcmask 654336
          %v2319 = vsel %vm2318, %v2317, %v2274
          %vm2320 = vcmask 785408
          %v2321 = vsel %vm2320, %v2319, %v2278
          %vm2322 = vcmask 916480
          %v2323 = vsel %vm2322, %v2321, %v2282
          %v2324 = vsel %vm928, %v2231, %v2286
          %v2325 = vsel %vm1885, %v2324, %v2290
          %v2326 = vsel %vm2314, %v2325, %v2294
          %v2327 = vsel %vm2316, %v2326, %v2298
          %v2328 = vsel %vm2318, %v2327, %v2302
          %v2329 = vsel %vm2320, %v2328, %v2306
          %v2330 = vsel %vm2322, %v2329, %v2310
          %v2333 = vrot.slane %v2330, 6
          %vm2334 = vcmask 1041408
          %v2335 = vsel %vm2334, %v2323, %v2333
          %2337 = vst [vmem:[#allocation14] sm:$0xf] %v2335
        $region115: #{tpu_custom_call.1} parent=71 // pred_fallthru
          _
        // Predicated region
        $region116: #{tpu_custom_call.1} parent=71 // pred_check
          %p2338 = pneg %p379
        $region117: #{tpu_custom_call.1} parent=71 // pred_check_branch
          %2340 = sbr.rel (%p2338) target = $region119
        $region118: #{tpu_custom_call.1} parent=71 // pred_region
          %2342 = vsyncadd [#allocation8], 0
          %s2344 = sshll.u32 [#allocation14], 4
          %s2345 = int_to_ptr.vmem [resolvable:$true] %s2344
          %s2346 = sshll.u32 %s14, 4
          %s2347 = int_to_ptr.hbm [resolvable:$true] %s2346
          %2349 = dma.vmem_to_hbm [thread:$0]  %s2345, 64, %s2347, [#allocation8]
        $region119: #{tpu_custom_call.1} parent=71 // pred_fallthru
          _
        // Predicated region
        $region120: #{tpu_custom_call.1} parent=71 // pred_check
          %p2350 = pneg %p379
        $region121: #{tpu_custom_call.1} parent=71 // pred_check_branch
          %2352 = sbr.rel (%p2350) target = $region123
        $region122: #{tpu_custom_call.1} parent=71 // pred_region
          %2354 = dma.done [#allocation8], 64
        $region123: #{tpu_custom_call.1} parent=71 // pred_fallthru
          _
      $region72: #{tpu_custom_call.1} parent=5 // pred_fallthru
        _
      %p2355 = scmp.le.s32.totalorder 2, %s28
      // Predicated region
      $region124: #{tpu_custom_call.1} parent=5 // pred_check
        %p2356 = pneg %p2355
      $region125: #{tpu_custom_call.1} parent=5 // pred_check_branch
        %2358 = sbr.rel (%p2356) target = $region127
      $region126: #{tpu_custom_call.1} parent=5 // pred_region
        %s2359 = ssub.s32 %s28, 2
      $region127: #{tpu_custom_call.1} parent=5 // pred_fallthru
        _
    $region6: #{tpu_custom_call.1} parent=1 // loop_footer
      %s32 = sadd.s32 1, %s28
    $region7: #{tpu_custom_call.1} parent=1 // loop_footer_branch
      %27 = sbr.rel target = $region3
    $region8: #{tpu_custom_call.1} parent=1 // loop_exit
      _
    %2360 = vsyncpa [#allocation7], 1
    %s2361 = scalar_lea.sflag [#allocation7], 1
    %2362 = vsyncpa %s2361, 1
    %2363 = vsyncpa [#allocation10], 1
    %s2364 = scalar_lea.sflag [#allocation10], 1
    %2365 = vsyncpa %s2364, 1
    %2366 = vsyncpa [#allocation13], 1
    %s2367 = scalar_lea.sflag [#allocation13], 1
    %2368 = vsyncpa %s2367, 1
    %2369 = vsyncpa [#allocation8], 1
    %s2370 = scalar_lea.sflag [#allocation8], 1
    %2371 = vsyncpa %s2370, 1
  %2372 = vsyncmov [#allocation5]
  %s2373 = vpop.sfrf %2372
  %p2374 = scmp.eq.s32.totalorder %s2373, 0
  %p2375 = pneg %p2374
  %2377 = shalt.err (%p2375)

</llo_original>
